<compile_context>
chip_gen: v7x
topology: tpu7x:2x2x1
jax: 0.10.0
libtpu: 0.0.40
codegen_flags: <defaults>
</compile_context>

<pallas_src>
import functools
import numpy as np

import jax
import jax.numpy as jnp
from jax import lax
from jax.experimental import pallas as pl
from jax.experimental.pallas import tpu as pltpu


def _round_up(x, m):
    return (x + m - 1) // m * m


# ----------------------------------------------------------------------------
# Anchor utilities (pure numpy glue, same semantics as the PyTorch module)
# ----------------------------------------------------------------------------
def generate_anchor_base(base_size=16, ratios=(0.5, 1, 2), anchor_scales=(8, 16, 32)):
    py = base_size / 2.0
    px = base_size / 2.0
    anchor_base = np.zeros((len(ratios) * len(anchor_scales), 4), dtype=np.float32)
    for i, r in enumerate(ratios):
        for j, s in enumerate(anchor_scales):
            h = base_size * s * np.sqrt(r)
            w = base_size * s * np.sqrt(1.0 / r)
            idx = i * len(anchor_scales) + j
            anchor_base[idx, 0] = py - h / 2.0
            anchor_base[idx, 1] = px - w / 2.0
            anchor_base[idx, 2] = py + h / 2.0
            anchor_base[idx, 3] = px + w / 2.0
    return anchor_base


def _enumerate_shifted_anchor(anchor_base, feat_stride, height, width):
    shift_y = np.arange(0, height * feat_stride, feat_stride)
    shift_x = np.arange(0, width * feat_stride, feat_stride)
    shift_x, shift_y = np.meshgrid(shift_x, shift_y)
    shift = np.stack((shift_y.ravel(), shift_x.ravel(),
                      shift_y.ravel(), shift_x.ravel()), axis=1)
    A = anchor_base.shape[0]
    K = shift.shape[0]
    anchor = anchor_base.reshape((1, A, 4)) + shift.reshape((1, K, 4)).transpose((1, 0, 2))
    anchor = anchor.reshape((K * A, 4)).astype(np.float32)
    return anchor


# ----------------------------------------------------------------------------
# Pallas kernel: conv1(3x3)+ReLU -> fused [loc | scores | fg] head.
# One grid step == one image of the batch.
# ----------------------------------------------------------------------------
def _rpn_kernel(xpad_ref, w1_ref, b1_ref, wh_ref, bh_ref, out_ref, *, H, W, A):
    x = xpad_ref[0]                          # (H+2, W+2, Cin) bf16
    cin = x.shape[-1]
    cmid = w1_ref.shape[-1]                  # mid channels padded to mult. of 128

    if cin < 128:
        # Small Cin: build the im2col slab once (lane-dense, in VMEM) and do a
        # single K = 9*Cin MXU matmul instead of 9 tiny-K pushes.
        patches = jnp.concatenate(
            [x[dh:dh + H, dw:dw + W, :].reshape(H * W, cin)
             for dh in range(3) for dw in range(3)],
            axis=-1)                                            # (HW, 9*Cin)
        acc = jnp.dot(patches, w1_ref[...],
                      preferred_element_type=jnp.float32)       # (HW, Cmid) f32
    else:
        # Production Cin (e.g. 512): K=Cin is already MXU-friendly; keep the
        # 9 shifted taps (each tap's RHS weight stays resident for its matmul).
        acc = jnp.zeros((H * W, cmid), jnp.float32)
        for t in range(9):
            dh, dw = t // 3, t % 3
            patch = x[dh:dh + H, dw:dw + W, :].reshape(H * W, cin)
            acc = acc + jnp.dot(patch, w1_ref[t * cin:(t + 1) * cin, :],
                                preferred_element_type=jnp.float32)

    h = jnp.maximum(acc + b1_ref[...], 0.0).astype(jnp.bfloat16)    # ReLU, (HW, Cmid)

    # Single fused head matmul: columns = [loc(4A) | scores(2A) | s1-s0(A) | pad].
    head = jnp.dot(h, wh_ref[...], preferred_element_type=jnp.float32) + bh_ref[...]

    # fg prob = sigmoid(s1 - s0), applied only on the fg-logit lanes via a lane
    # mask (tanh identity -> EUP slot, numerically stable, no VPU divide).
    lane = lax.broadcasted_iota(jnp.int32, head.shape, dimension=1)
    is_fg = (lane >= 6 * A) & (lane < 7 * A)
    sig = 0.5 * (jnp.tanh(0.5 * head) + 1.0)
    out_ref[0] = jnp.where(is_fg, sig, head).astype(out_ref.dtype)


# ----------------------------------------------------------------------------
# Wrapper: layout conversion, fused weight packing, pallas_call, output slicing
# ----------------------------------------------------------------------------
def rpn_pallas_forward(x_nchw, params, img_size, scale=1.0,
                       feat_stride=16, anchor_base=None):
    n, cin, hh, ww = x_nchw.shape
    anchor = _enumerate_shifted_anchor(np.array(anchor_base), feat_stride, hh, ww)
    A = anchor_base.shape[0]

    w1, b1 = params["w1"], params["b1"]                       # (Cmid, Cin, 3, 3), (Cmid,)
    w_score, b_score = params["w_score"], params["b_score"]   # (2A, Cmid, 1, 1), (2A,)
    w_loc, b_loc = params["w_loc"], params["b_loc"]           # (4A, Cmid, 1, 1), (4A,)
    cmid = w1.shape[0]
    cmid_p = _round_up(cmid, 128)
    n_head = 7 * A                                            # 4A loc + 2A scores + A fg
    npad = _round_up(max(n_head, 128), 128)

    # conv1 weight: OIHW -> (kh, kw, Cin, Cmid) -> flat (9*Cin, Cmid_p), bf16.
    w1_k = jnp.transpose(w1, (2, 3, 1, 0)).reshape(9 * cin, cmid)
    w1_k = jnp.pad(w1_k, ((0, 0), (0, cmid_p - cmid))).astype(jnp.bfloat16)
    b1_k = jnp.pad(b1, (0, cmid_p - cmid)).reshape(1, cmid_p).astype(jnp.float32)

    # Fused head weight (Cmid_p, npad): [loc | scores | s1-s0 | zero pad], bf16.
    wloc_nat = jnp.transpose(w_loc[:, :, 0, 0], (1, 0))       # (Cmid, 4A)
    wsc_nat = jnp.transpose(w_score[:, :, 0, 0], (1, 0))      # (Cmid, 2A) bg/fg interleaved
    wdiff = wsc_nat[:, 1::2] - wsc_nat[:, 0::2]               # (Cmid, A) fg-logit weights
    w_head = jnp.concatenate([wloc_nat, wsc_nat, wdiff], axis=1)
    w_head = jnp.pad(w_head, ((0, cmid_p - cmid), (0, npad - n_head))).astype(jnp.bfloat16)
    b_head = jnp.concatenate([b_loc, b_score, b_score[1::2] - b_score[0::2]])
    b_head = jnp.pad(b_head, (0, npad - n_head)).reshape(1, npad).astype(jnp.float32)

    # NCHW -> NHWC bf16 (halved DMA bytes), zero pad H/W by 1 for the 3x3 conv.
    # TODO(synk): accepting NHWC features upstream (or in-kernel halo handling)
    # would remove this transpose+pad HBM pass entirely.
    x_nhwc = jnp.transpose(x_nchw, (0, 2, 3, 1)).astype(jnp.bfloat16)
    xpad = jnp.pad(x_nhwc, ((0, 0), (1, 1), (1, 1), (0, 0)))

    HW = hh * ww
    kernel = functools.partial(_rpn_kernel, H=hh, W=ww, A=A)
    fused = pl.pallas_call(
        kernel,
        out_shape=jax.ShapeDtypeStruct((n, HW, npad), jnp.float32),
        grid=(n,),
        in_specs=[
            pl.BlockSpec((1, hh + 2, ww + 2, cin), lambda i: (i, 0, 0, 0)),
            pl.BlockSpec((9 * cin, cmid_p), lambda i: (0, 0)),
            pl.BlockSpec((1, cmid_p), lambda i: (0, 0)),
            pl.BlockSpec((cmid_p, npad), lambda i: (0, 0)),
            pl.BlockSpec((1, npad), lambda i: (0, 0)),
        ],
        out_specs=pl.BlockSpec((1, HW, npad), lambda i: (i, 0, 0)),
        compiler_params=pltpu.CompilerParams(
            dimension_semantics=("parallel",),
            vmem_limit_bytes=32 * 1024 * 1024),
    )(xpad, w1_k, b1_k, w_head, b_head)
    # TODO(synk): for production single-image RPN shapes (Cin=Cmid=512, H~W~64)
    # add a second H-strip grid axis so both v7x TensorCores get work.

    # Slice the packed lane-dense output (no re-interleave pass needed).
    rpn_locs = fused[:, :, :4 * A].reshape(n, HW * A, 4)
    rpn_scores = fused[:, :, 4 * A:6 * A].reshape(n, HW * A, 2)
    rpn_fg_scores = fused[:, :, 6 * A:7 * A].reshape(n, HW * A)

    # TODO(synk): ProposalCreator (bbox decode + clip + NMS + top-k) has no clean
    # Pallas equivalent; rois / roi_indices are returned empty.
    rois = np.zeros((0, 4), dtype=np.float32)
    roi_indices = np.zeros((0,), dtype=np.int32)
    return rpn_locs, rpn_scores, rpn_fg_scores, rois, roi_indices, anchor


# ----------------------------------------------------------------------------
# Pure-JAX f32 reference (mirrors the PyTorch forward, minus ProposalCreator)
# ----------------------------------------------------------------------------
def rpn_reference(x_nchw, params, A):
    dn = ("NCHW", "OIHW", "NCHW")
    w1, b1 = params["w1"], params["b1"]
    w_score, b_score = params["w_score"], params["b_score"]
    w_loc, b_loc = params["w_loc"], params["b_loc"]
    n, _, hh, ww = x_nchw.shape

    h = lax.conv_general_dilated(x_nchw, w1, (1, 1), ((1, 1), (1, 1)),
                                 dimension_numbers=dn) + b1[None, :, None, None]
    h = jax.nn.relu(h)
    loc = lax.conv_general_dilated(h, w_loc, (1, 1), ((0, 0), (0, 0)),
                                   dimension_numbers=dn) + b_loc[None, :, None, None]
    score = lax.conv_general_dilated(h, w_score, (1, 1), ((0, 0), (0, 0)),
                                     dimension_numbers=dn) + b_score[None, :, None, None]
    rpn_locs = jnp.transpose(loc, (0, 2, 3, 1)).reshape(n, -1, 4)
    rpn_scores = jnp.transpose(score, (0, 2, 3, 1)).reshape(n, -1, 2)
    fg = jax.nn.softmax(rpn_scores.reshape(n, hh, ww, A, 2), axis=4)[..., 1].reshape(n, -1)
    return rpn_locs, rpn_scores, fg


if __name__ == "__main__":
    # Small, module-consistent shapes.
    N, C_IN, C_MID, H, W = 2, 16, 32, 16, 16
    RATIOS, SCALES, FEAT_STRIDE = (0.5, 1, 2), (8, 16, 32), 16
    anchor_base = generate_anchor_base(ratios=RATIOS, anchor_scales=SCALES)
    A = anchor_base.shape[0]                               # 9 anchors / pixel

    key = jax.random.PRNGKey(0)
    kx, k1, k2, k3 = jax.random.split(key, 4)
    x = jax.random.normal(kx, (N, C_IN, H, W), dtype=jnp.float32)

    # normal_init(mean=0, stddev=0.01), zero biases — deterministic via PRNGKey(0).
    params = {
        "w1": 0.01 * jax.random.normal(k1, (C_MID, C_IN, 3, 3), dtype=jnp.float32),
        "b1": jnp.zeros((C_MID,), dtype=jnp.float32),
        "w_score": 0.01 * jax.random.normal(k2, (2 * A, C_MID, 1, 1), dtype=jnp.float32),
        "b_score": jnp.zeros((2 * A,), dtype=jnp.float32),
        "w_loc": 0.01 * jax.random.normal(k3, (4 * A, C_MID, 1, 1), dtype=jnp.float32),
        "b_loc": jnp.zeros((4 * A,), dtype=jnp.float32),
    }

    img_size = (H * FEAT_STRIDE, W * FEAT_STRIDE)
    rpn_locs, rpn_scores, rpn_fg, rois, roi_indices, anchor = rpn_pallas_forward(
        x, params, img_size, scale=1.0, feat_stride=FEAT_STRIDE, anchor_base=anchor_base)
    jax.block_until_ready((rpn_locs, rpn_scores, rpn_fg))

    # Sanity check against a plain-JAX f32 reference (bf16-matmul tolerances).
    ref_locs, ref_scores, ref_fg = rpn_reference(x, params, A)
    assert rpn_locs.shape == (N, H * W * A, 4)
    assert rpn_scores.shape == (N, H * W * A, 2)
    assert rpn_fg.shape == (N, H * W * A)
    assert anchor.shape == (H * W * A, 4)
    assert np.allclose(np.asarray(rpn_locs), np.asarray(ref_locs), atol=2e-3, rtol=2e-2)
    assert np.allclose(np.asarray(rpn_scores), np.asarray(ref_scores), atol=2e-3, rtol=2e-2)
    assert np.allclose(np.asarray(rpn_fg), np.asarray(ref_fg), atol=2e-3, rtol=2e-2)

    print("KERNEL_OK")
</pallas_src>

<mosaic_0001>
module attributes {stable_mosaic.version = 11 : i64} {
  func.func @_rpn_kernel(%arg0: i32, %arg1: memref<1x18x18x16xbf16, #tpu.memory_space<vmem>>, %arg2: memref<144x128xbf16, #tpu.memory_space<vmem>>, %arg3: memref<1x128xf32, #tpu.memory_space<vmem>>, %arg4: memref<128x128xbf16, #tpu.memory_space<vmem>>, %arg5: memref<1x128xf32, #tpu.memory_space<vmem>>, %arg6: memref<1x256x128xf32, #tpu.memory_space<vmem>>) attributes {dimension_semantics = [#tpu.dimension_semantics<parallel>], iteration_bounds = array<i64: 2>, scalar_prefetch = 0 : i64, scratch_operands = 0 : i64, tpu.core_type = #tpu.core_type<tc>, window_params = [{transform_indices = @transform_0, window_bounds = array<i64: 1, 18, 18, 16>}, {pipeline_mode = #tpu.pipeline_mode<synchronous>, transform_indices = @transform_1, window_bounds = array<i64: 144, 128>}, {pipeline_mode = #tpu.pipeline_mode<synchronous>, transform_indices = @transform_2, window_bounds = array<i64: 1, 128>}, {pipeline_mode = #tpu.pipeline_mode<synchronous>, transform_indices = @transform_3, window_bounds = array<i64: 128, 128>}, {pipeline_mode = #tpu.pipeline_mode<synchronous>, transform_indices = @transform_4, window_bounds = array<i64: 1, 128>}, {transform_indices = @transform_5, window_bounds = array<i64: 1, 256, 128>}]} {
    %c0 = arith.constant 0 : index
    %c0_0 = arith.constant 0 : index
    %c0_1 = arith.constant 0 : index
    %c0_2 = arith.constant 0 : index
    %0 = vector.load %arg1[%c0, %c0_0, %c0_1, %c0_2] : memref<1x18x18x16xbf16, #tpu.memory_space<vmem>>, vector<1x18x18x16xbf16>
    %1 = vector.shape_cast %0 : vector<1x18x18x16xbf16> to vector<18x18x16xbf16>
    %2 = vector.extract_strided_slice %1 {offsets = [0, 0, 0], sizes = [16, 16, 16], strides = [1, 1, 1]} : vector<18x18x16xbf16> to vector<16x16x16xbf16>
    %3 = vector.shape_cast %2 : vector<16x16x16xbf16> to vector<256x16xbf16>
    %4 = vector.extract_strided_slice %1 {offsets = [0, 1, 0], sizes = [16, 16, 16], strides = [1, 1, 1]} : vector<18x18x16xbf16> to vector<16x16x16xbf16>
    %5 = vector.shape_cast %4 : vector<16x16x16xbf16> to vector<256x16xbf16>
    %6 = vector.extract_strided_slice %1 {offsets = [0, 2, 0], sizes = [16, 16, 16], strides = [1, 1, 1]} : vector<18x18x16xbf16> to vector<16x16x16xbf16>
    %7 = vector.shape_cast %6 : vector<16x16x16xbf16> to vector<256x16xbf16>
    %8 = vector.extract_strided_slice %1 {offsets = [1, 0, 0], sizes = [16, 16, 16], strides = [1, 1, 1]} : vector<18x18x16xbf16> to vector<16x16x16xbf16>
    %9 = vector.shape_cast %8 : vector<16x16x16xbf16> to vector<256x16xbf16>
    %10 = vector.extract_strided_slice %1 {offsets = [1, 1, 0], sizes = [16, 16, 16], strides = [1, 1, 1]} : vector<18x18x16xbf16> to vector<16x16x16xbf16>
    %11 = vector.shape_cast %10 : vector<16x16x16xbf16> to vector<256x16xbf16>
    %12 = vector.extract_strided_slice %1 {offsets = [1, 2, 0], sizes = [16, 16, 16], strides = [1, 1, 1]} : vector<18x18x16xbf16> to vector<16x16x16xbf16>
    %13 = vector.shape_cast %12 : vector<16x16x16xbf16> to vector<256x16xbf16>
    %14 = vector.extract_strided_slice %1 {offsets = [2, 0, 0], sizes = [16, 16, 16], strides = [1, 1, 1]} : vector<18x18x16xbf16> to vector<16x16x16xbf16>
    %15 = vector.shape_cast %14 : vector<16x16x16xbf16> to vector<256x16xbf16>
    %16 = vector.extract_strided_slice %1 {offsets = [2, 1, 0], sizes = [16, 16, 16], strides = [1, 1, 1]} : vector<18x18x16xbf16> to vector<16x16x16xbf16>
    %17 = vector.shape_cast %16 : vector<16x16x16xbf16> to vector<256x16xbf16>
    %18 = vector.extract_strided_slice %1 {offsets = [2, 2, 0], sizes = [16, 16, 16], strides = [1, 1, 1]} : vector<18x18x16xbf16> to vector<16x16x16xbf16>
    %19 = vector.shape_cast %18 : vector<16x16x16xbf16> to vector<256x16xbf16>
    %20 = tpu.concatenate %3, %5, %7, %9, %11, %13, %15, %17, %19 in 1 : vector<256x16xbf16>, vector<256x16xbf16>, vector<256x16xbf16>, vector<256x16xbf16>, vector<256x16xbf16>, vector<256x16xbf16>, vector<256x16xbf16>, vector<256x16xbf16>, vector<256x16xbf16> -> vector<256x144xbf16>
    %c0_3 = arith.constant 0 : index
    %c0_4 = arith.constant 0 : index
    %21 = vector.load %arg2[%c0_3, %c0_4] : memref<144x128xbf16, #tpu.memory_space<vmem>>, vector<144x128xbf16>
    %cst = arith.constant dense<0.000000e+00> : vector<256x128xf32>
    %22 = tpu.matmul %20, %21, %cst {dimension_numbers = #tpu.dot_dimension_numbers<[1], [0], [0], [1], [0, 0, 1, 1], [], []>} : vector<256x144xbf16>, vector<144x128xbf16>, vector<256x128xf32> -> vector<256x128xf32>
    %c0_5 = arith.constant 0 : index
    %c0_6 = arith.constant 0 : index
    %23 = vector.load %arg3[%c0_5, %c0_6] : memref<1x128xf32, #tpu.memory_space<vmem>>, vector<1x128xf32>
    %24 = vector.broadcast %23 : vector<1x128xf32> to vector<256x128xf32>
    %25 = arith.addf %22, %24 : vector<256x128xf32>
    %cst_7 = arith.constant 0.000000e+00 : f32
    %26 = vector.broadcast %cst_7 : f32 to vector<256x128xf32>
    %27 = arith.maximumf %25, %26 : vector<256x128xf32>
    %28 = arith.truncf %27 : vector<256x128xf32> to vector<256x128xbf16>
    %c0_8 = arith.constant 0 : index
    %c0_9 = arith.constant 0 : index
    %29 = vector.load %arg4[%c0_8, %c0_9] : memref<128x128xbf16, #tpu.memory_space<vmem>>, vector<128x128xbf16>
    %cst_10 = arith.constant dense<0.000000e+00> : vector<256x128xf32>
    %30 = tpu.matmul %28, %29, %cst_10 {dimension_numbers = #tpu.dot_dimension_numbers<[1], [0], [0], [1], [0, 0, 1, 1], [], []>} : vector<256x128xbf16>, vector<128x128xbf16>, vector<256x128xf32> -> vector<256x128xf32>
    %c0_11 = arith.constant 0 : index
    %c0_12 = arith.constant 0 : index
    %31 = vector.load %arg5[%c0_11, %c0_12] : memref<1x128xf32, #tpu.memory_space<vmem>>, vector<1x128xf32>
    %32 = vector.broadcast %31 : vector<1x128xf32> to vector<256x128xf32>
    %33 = arith.addf %30, %32 : vector<256x128xf32>
    %34 = tpu.iota {dimensions = array<i32: 1>} : vector<256x128xi32>
    %c54_i32 = arith.constant 54 : i32
    %35 = vector.broadcast %c54_i32 : i32 to vector<256x128xi32>
    %36 = arith.cmpi sge, %34, %35 : vector<256x128xi32>
    %c63_i32 = arith.constant 63 : i32
    %37 = vector.broadcast %c63_i32 : i32 to vector<256x128xi32>
    %38 = arith.cmpi slt, %34, %37 : vector<256x128xi32>
    %39 = arith.andi %36, %38 : vector<256x128xi1>
    %cst_13 = arith.constant 5.000000e-01 : f32
    %40 = vector.broadcast %cst_13 : f32 to vector<256x128xf32>
    %41 = arith.mulf %40, %33 : vector<256x128xf32>
    %42 = math.tanh %41 : vector<256x128xf32>
    %cst_14 = arith.constant 1.000000e+00 : f32
    %43 = vector.broadcast %cst_14 : f32 to vector<256x128xf32>
    %44 = arith.addf %42, %43 : vector<256x128xf32>
    %cst_15 = arith.constant 5.000000e-01 : f32
    %45 = vector.broadcast %cst_15 : f32 to vector<256x128xf32>
    %46 = arith.mulf %45, %44 : vector<256x128xf32>
    %47 = arith.select %39, %46, %33 : vector<256x128xi1>, vector<256x128xf32>
    %c0_16 = arith.constant 0 : index
    %c0_17 = arith.constant 0 : index
    %c0_18 = arith.constant 0 : index
    %48 = vector.load %arg6[%c0_16, %c0_17, %c0_18] : memref<1x256x128xf32, #tpu.memory_space<vmem>>, vector<1x256x128xf32>
    %49 = vector.shape_cast %48 : vector<1x256x128xf32> to vector<256x128xf32>
    %50 = vector.shape_cast %47 : vector<256x128xf32> to vector<1x256x128xf32>
    tpu.vector_store %arg6[%c0_16, %c0_17, %c0_18], %50 {strides = array<i32>} : memref<1x256x128xf32, #tpu.memory_space<vmem>>, vector<1x256x128xf32>,
    return
  }
  func.func @transform_0(%arg0: i32) -> (i32, i32, i32, i32) {
    %c0_i32 = arith.constant 0 : i32
    %c0_i32_0 = arith.constant 0 : i32
    %c0_i32_1 = arith.constant 0 : i32
    %c0_i32_2 = arith.constant 0 : i32
    return %arg0, %c0_i32, %c0_i32_0, %c0_i32_1 : i32, i32, i32, i32
  }
  func.func @transform_1(%arg0: i32) -> (i32, i32) {
    %c0_i32 = arith.constant 0 : i32
    %c0_i32_0 = arith.constant 0 : i32
    %c0_i32_1 = arith.constant 0 : i32
    return %c0_i32, %c0_i32_0 : i32, i32
  }
  func.func @transform_2(%arg0: i32) -> (i32, i32) {
    %c0_i32 = arith.constant 0 : i32
    %c0_i32_0 = arith.constant 0 : i32
    %c0_i32_1 = arith.constant 0 : i32
    return %c0_i32, %c0_i32_0 : i32, i32
  }
  func.func @transform_3(%arg0: i32) -> (i32, i32) {
    %c0_i32 = arith.constant 0 : i32
    %c0_i32_0 = arith.constant 0 : i32
    %c0_i32_1 = arith.constant 0 : i32
    return %c0_i32, %c0_i32_0 : i32, i32
  }
  func.func @transform_4(%arg0: i32) -> (i32, i32) {
    %c0_i32 = arith.constant 0 : i32
    %c0_i32_0 = arith.constant 0 : i32
    %c0_i32_1 = arith.constant 0 : i32
    return %c0_i32, %c0_i32_0 : i32, i32
  }
  func.func @transform_5(%arg0: i32) -> (i32, i32, i32) {
    %c0_i32 = arith.constant 0 : i32
    %c0_i32_0 = arith.constant 0 : i32
    %c0_i32_1 = arith.constant 0 : i32
    return %arg0, %c0_i32, %c0_i32_0 : i32, i32, i32
  }
}

</mosaic_0001>

<llo_original>
// kernel: tpu_custom_call.1
$region0: #{tpu_custom_call.1}
  #allocation0 [shape = 'u32[]', space=smem, size = 0x4, offset = 0x4, fixed_abs, tag = 'smem constant byte address 0x4 - core index']
  #allocation1 [shape = 'u32[144,128]{1,0:T(1,128)}', space=vmem, size = 0x12000, scoped, tag = 'internal scratch']
  %s0 = inlined_call_operand.vmem [shape: bf16[2,18,18,16], index: 0, kind: input, shape index: {}]
  %s1 = inlined_call_operand.vmem [shape: bf16[144,128], index: 1, kind: input, shape index: {}]
  %s2 = inlined_call_operand.vmem [shape: f32[1,128], index: 2, kind: input, shape index: {}]
  %s3 = inlined_call_operand.vmem [shape: bf16[128,128], index: 3, kind: input, shape index: {}]
  %s4 = inlined_call_operand.vmem [shape: f32[1,128], index: 4, kind: input, shape index: {}]
  %s5 = inlined_call_operand.hbm [shape: f32[2,256,128], index: 5, kind: output, shape index: {}]
  %s6 = sld [smem:[#allocation0]]
  $region53: #{tpu_custom_call.1} parent=0
    _
  %s8 = ssub.s32 1, %s6
  %s9 = scalar_select 0, %s8, %s6
  $region1: #{tpu_custom_call.1} parent=0
    #allocation2 [shape = 'u8[262144]{0}', space=vmem, size = 0x40000, scoped, tag = 'output window, operand 0']
    #allocation3 [shape = 's32[2]{0}', space=sflag, size = 0x8, scoped, tag = 'scoped memory for tpu_custom_call.1']
    %10 = vsyncpa [#allocation3], 0
    %s11 = scalar_lea.sflag [#allocation3], 1
    %12 = vsyncpa %s11, 0
    loop: start=0, step=1, limit=4
    $region2: #{tpu_custom_call.1} parent=1 // loop_pre_header
      _
    $region3: #{tpu_custom_call.1} parent=1 // loop_header
      %s14 = sphi 0, %s18
      %p15 = scmp.ge.s32.totalorder %s14, 4
      %s24 = sphi 0, %s26
      %s27 = sphi 0, %s24
      %s28 = sphi 0, %s27
      %s44 = sphi 0, %s28
      %s48 = sphi 0, %s48
      %s50 = sphi 0, %s48
      %s51 = sphi 0, %s50
      %s65 = sphi 0, %s51
      %s69 = sphi 0, %s69
      %s71 = sphi 0, %s69
      %s72 = sphi 0, %s71
      %s86 = sphi 0, %s72
      %s90 = sphi 0, %s90
      %s92 = sphi 0, %s90
      %s93 = sphi 0, %s92
      %s107 = sphi 0, %s93
      %s111 = sphi 0, %s111
      %s113 = sphi 0, %s111
      %s114 = sphi 0, %s113
      %s128 = sphi 0, %s114
      %s134 = sphi 0, %s136
      %s137 = sphi 0, %s134
      %s138 = sphi 0, %s137
      %s154 = sphi 0, %s138
    $region4: #{tpu_custom_call.1} parent=1 // loop_header_branch
      %17 = sbr.rel (%p15) target = $region8
    $region5: #{tpu_custom_call.1} parent=1 // loop_body
      %s19 = ssub.s32 %s14, 1
      %s20 = ssub.s32 %s14, 2
      %s21 = sadd.s32 %s14, 1
      %s22 = ssub.s32 %s14, %s21
      %p23 = scmp.eq.s32.totalorder %s22, 0
      %s25 = sadd.s32 %s24, 1
      %s26 = scalar_select %p23, %s24, %s25
      %p29 = pneg %p23
      %p30 = scmp.eq.s32.totalorder %s14, 1
      %p31 = por %p29, %p30
      %p32 = scmp.ne.s32.totalorder %s24, %s27
      %p33 = scmp.eq.s32.totalorder %s14, 0
      %p34 = por %p32, %p33
      %p35 = scmp.ne.s32.totalorder %s24, %s27
      %p36 = scmp.eq.s32.totalorder %s19, 1
      %p37 = por %p35, %p36
      %p38 = scmp.ne.s32.totalorder %s27, %s28
      %p39 = scmp.eq.s32.totalorder %s19, 0
      %p40 = por %p38, %p39
      %p41 = scmp.ne.s32.totalorder %s27, %s28
      %p42 = scmp.eq.s32.totalorder %s20, 1
      %p43 = por %p41, %p42
      %p45 = scmp.ne.s32.totalorder %s28, %s44
      %p46 = scmp.eq.s32.totalorder %s20, 0
      %p47 = por %p45, %p46
      %s49 = sadd.s32 %s48, 1
      %p52 = scmp.eq.s32.totalorder %s14, 1
      %p53 = scmp.ne.s32.totalorder %s48, %s50
      %p54 = scmp.eq.s32.totalorder %s14, 0
      %p55 = por %p53, %p54
      %p56 = scmp.ne.s32.totalorder %s48, %s50
      %p57 = scmp.eq.s32.totalorder %s19, 1
      %p58 = por %p56, %p57
      %p59 = scmp.ne.s32.totalorder %s50, %s51
      %p60 = scmp.eq.s32.totalorder %s19, 0
      %p61 = por %p59, %p60
      %p62 = scmp.ne.s32.totalorder %s50, %s51
      %p63 = scmp.eq.s32.totalorder %s20, 1
      %p64 = por %p62, %p63
      %p66 = scmp.ne.s32.totalorder %s51, %s65
      %p67 = scmp.eq.s32.totalorder %s20, 0
      %p68 = por %p66, %p67
      %s70 = sadd.s32 %s69, 1
      %p73 = scmp.eq.s32.totalorder %s14, 1
      %p74 = scmp.ne.s32.totalorder %s69, %s71
      %p75 = scmp.eq.s32.totalorder %s14, 0
      %p76 = por %p74, %p75
      %p77 = scmp.ne.s32.totalorder %s69, %s71
      %p78 = scmp.eq.s32.totalorder %s19, 1
      %p79 = por %p77, %p78
      %p80 = scmp.ne.s32.totalorder %s71, %s72
      %p81 = scmp.eq.s32.totalorder %s19, 0
      %p82 = por %p80, %p81
      %p83 = scmp.ne.s32.totalorder %s71, %s72
      %p84 = scmp.eq.s32.totalorder %s20, 1
      %p85 = por %p83, %p84
      %p87 = scmp.ne.s32.totalorder %s72, %s86
      %p88 = scmp.eq.s32.totalorder %s20, 0
      %p89 = por %p87, %p88
      %s91 = sadd.s32 %s90, 1
      %p94 = scmp.eq.s32.totalorder %s14, 1
      %p95 = scmp.ne.s32.totalorder %s90, %s92
      %p96 = scmp.eq.s32.totalorder %s14, 0
      %p97 = por %p95, %p96
      %p98 = scmp.ne.s32.totalorder %s90, %s92
      %p99 = scmp.eq.s32.totalorder %s19, 1
      %p100 = por %p98, %p99
      %p101 = scmp.ne.s32.totalorder %s92, %s93
      %p102 = scmp.eq.s32.totalorder %s19, 0
      %p103 = por %p101, %p102
      %p104 = scmp.ne.s32.totalorder %s92, %s93
      %p105 = scmp.eq.s32.totalorder %s20, 1
      %p106 = por %p104, %p105
      %p108 = scmp.ne.s32.totalorder %s93, %s107
      %p109 = scmp.eq.s32.totalorder %s20, 0
      %p110 = por %p108, %p109
      %s112 = sadd.s32 %s111, 1
      %p115 = scmp.eq.s32.totalorder %s14, 1
      %p116 = scmp.ne.s32.totalorder %s111, %s113
      %p117 = scmp.eq.s32.totalorder %s14, 0
      %p118 = por %p116, %p117
      %p119 = scmp.ne.s32.totalorder %s111, %s113
      %p120 = scmp.eq.s32.totalorder %s19, 1
      %p121 = por %p119, %p120
      %p122 = scmp.ne.s32.totalorder %s113, %s114
      %p123 = scmp.eq.s32.totalorder %s19, 0
      %p124 = por %p122, %p123
      %p125 = scmp.ne.s32.totalorder %s113, %s114
      %p126 = scmp.eq.s32.totalorder %s20, 1
      %p127 = por %p125, %p126
      %p129 = scmp.ne.s32.totalorder %s114, %s128
      %p130 = scmp.eq.s32.totalorder %s20, 0
      %p131 = por %p129, %p130
      %s132 = ssub.s32 %s14, %s21
      %p133 = scmp.eq.s32.totalorder %s132, 0
      %s135 = sadd.s32 %s134, 1
      %s136 = scalar_select %p133, %s134, %s135
      %p139 = pneg %p133
      %p140 = scmp.eq.s32.totalorder %s14, 1
      %p141 = por %p139, %p140
      %p142 = scmp.ne.s32.totalorder %s134, %s137
      %p143 = scmp.eq.s32.totalorder %s14, 0
      %p144 = por %p142, %p143
      %p145 = scmp.ne.s32.totalorder %s134, %s137
      %p146 = scmp.eq.s32.totalorder %s19, 1
      %p147 = por %p145, %p146
      %p148 = scmp.ne.s32.totalorder %s137, %s138
      %p149 = scmp.eq.s32.totalorder %s19, 0
      %p150 = por %p148, %p149
      %p151 = scmp.ne.s32.totalorder %s137, %s138
      %p152 = scmp.eq.s32.totalorder %s20, 1
      %p153 = por %p151, %p152
      %p155 = scmp.ne.s32.totalorder %s138, %s154
      %p156 = scmp.eq.s32.totalorder %s20, 0
      %p157 = por %p155, %p156
      %p158 = scmp.le.s32.totalorder 1, %s14
      %p159 = scmp.lt.s32.totalorder %s14, 3
      %p160 = pnand %p158, %p159
      %p161 = pneg %p160
      // Predicated region
      $region9: #{tpu_custom_call.1} parent=5 // pred_check
        _
      $region10: #{tpu_custom_call.1} parent=5 // pred_check_branch
        %163 = sbr.rel (%p160) target = $region12
      $region11: #{tpu_custom_call.1} parent=5 // pred_region
        %s164 = ssub.s32 %s14, 1
        // Predicated region
        $region13: #{tpu_custom_call.1} parent=11 // pred_check
          %p165 = pneg %p61
        $region14: #{tpu_custom_call.1} parent=11 // pred_check_branch
          %167 = sbr.rel (%p165) target = $region16
        $region15: #{tpu_custom_call.1} parent=11 // pred_region
          _
        $region16: #{tpu_custom_call.1} parent=11 // pred_fallthru
          _
        // Predicated region
        $region17: #{tpu_custom_call.1} parent=11 // pred_check
          %p168 = pneg %p82
        $region18: #{tpu_custom_call.1} parent=11 // pred_check_branch
          %170 = sbr.rel (%p168) target = $region20
        $region19: #{tpu_custom_call.1} parent=11 // pred_region
          _
        $region20: #{tpu_custom_call.1} parent=11 // pred_fallthru
          _
        // Predicated region
        $region21: #{tpu_custom_call.1} parent=11 // pred_check
          %p171 = pneg %p103
        $region22: #{tpu_custom_call.1} parent=11 // pred_check_branch
          %173 = sbr.rel (%p171) target = $region24
        $region23: #{tpu_custom_call.1} parent=11 // pred_region
          _
        $region24: #{tpu_custom_call.1} parent=11 // pred_fallthru
          _
        // Predicated region
        $region25: #{tpu_custom_call.1} parent=11 // pred_check
          %p174 = pneg %p124
        $region26: #{tpu_custom_call.1} parent=11 // pred_check_branch
          %176 = sbr.rel (%p174) target = $region28
        $region27: #{tpu_custom_call.1} parent=11 // pred_region
          _
        $region28: #{tpu_custom_call.1} parent=11 // pred_fallthru
          _
      $region12: #{tpu_custom_call.1} parent=5 // pred_fallthru
        _
      %p177 = scmp.lt.s32.totalorder %s14, 2
      // Predicated region
      $region29: #{tpu_custom_call.1} parent=5 // pred_check
        %p178 = pneg %p177
      $region30: #{tpu_custom_call.1} parent=5 // pred_check_branch
        %180 = sbr.rel (%p178) target = $region32
      $region31: #{tpu_custom_call.1} parent=5 // pred_region
        // Predicated region
        $region33: #{tpu_custom_call.1} parent=31 // pred_check
          %p181 = pneg %p34
        $region34: #{tpu_custom_call.1} parent=31 // pred_check_branch
          %183 = sbr.rel (%p181) target = $region36
        $region35: #{tpu_custom_call.1} parent=31 // pred_region
          %p184 = scmp.lt.s32.totalorder %s14, 1
          %s185 = scalar_select %p184, %s14, 1
          %s186 = smul.addr %s185, 54
          %s187 = smul.addr %s186, 4
          %s188 = scalar_lea.vmem %s0, %s187
        $region36: #{tpu_custom_call.1} parent=31 // pred_fallthru
          _
      $region32: #{tpu_custom_call.1} parent=5 // pred_fallthru
        _
      %p189 = scmp.le.s32.totalorder 1, %s14
      %p190 = scmp.lt.s32.totalorder %s14, 3
      %p191 = pnand %p189, %p190
      %p192 = pneg %p191
      // Predicated region
      $region37: #{tpu_custom_call.1} parent=5 // pred_check
        _
      $region38: #{tpu_custom_call.1} parent=5 // pred_check_branch
        %194 = sbr.rel (%p191) target = $region40
      $region39: #{tpu_custom_call.1} parent=5 // pred_region
        %s195 = ssub.s32 %s14, 1
        %p196 = scmp.lt.s32.totalorder %s19, 1
        %s197 = scalar_select %p196, %s19, 1
        %s198 = smul.addr %s197, 54
        %s199 = smul.addr %s198, 4
        %s200 = scalar_lea.vmem %s0, %s199
        %p201 = pneg %p40
        %p202 = pneg %p37
        %p203 = pneg %p61
        %p204 = pneg %p58
        %p205 = pneg %p82
        %p206 = pneg %p79
        %p207 = pneg %p103
        %p208 = pneg %p100
        %p209 = pneg %p124
        %p210 = pneg %p121
        %p211 = pneg %p150
        %p212 = pneg %p147
        %s213 = sand.u32 %s137, 1
        %s214 = scalar_lea.sflag [#allocation3], %s213
        %s215 = sand.u32 %s137, 1
        %s216 = smul.addr %s215, 256
        %s217 = scalar_lea.vmem [#allocation2], %s216
        %p218 = scmp.lt.s32.totalorder %s19, 1
        %s219 = scalar_select %p218, %s19, 1
        %s220 = smul.addr %s219, 54
        %s221 = smul.addr %s220, 4
        %s222 = scalar_lea.vmem %s0, %s221
        %v224 = vld [vmem:[%s222] sm:$0xf]
        %v225 = vld [vmem:[%s222 + $0x4] sm:$0xf]
        %v226 = vld [vmem:[%s222 + $0x8] sm:$0x1]
        %v227 = vld [vmem:[%s222 + $0xc] sm:$0xf]
        %v228 = vld [vmem:[%s222 + $0x10] sm:$0xf]
        %v229 = vld [vmem:[%s222 + $0x14] sm:$0x1]
        %v230 = vld [vmem:[%s222 + $0x18] sm:$0xf]
        %v231 = vld [vmem:[%s222 + $0x1c] sm:$0xf]
        %v232 = vld [vmem:[%s222 + $0x20] sm:$0x1]
        %v233 = vld [vmem:[%s222 + $0x24] sm:$0xf]
        %v234 = vld [vmem:[%s222 + $0x28] sm:$0xf]
        %v235 = vld [vmem:[%s222 + $0x2c] sm:$0x1]
        %v236 = vld [vmem:[%s222 + $0x30] sm:$0xf]
        %v237 = vld [vmem:[%s222 + $0x34] sm:$0xf]
        %v238 = vld [vmem:[%s222 + $0x38] sm:$0x1]
        %v239 = vld [vmem:[%s222 + $0x3c] sm:$0xf]
        %v240 = vld [vmem:[%s222 + $0x40] sm:$0xf]
        %v241 = vld [vmem:[%s222 + $0x44] sm:$0x1]
        %v242 = vld [vmem:[%s222 + $0x48] sm:$0xf]
        %v243 = vld [vmem:[%s222 + $0x4c] sm:$0xf]
        %v244 = vld [vmem:[%s222 + $0x50] sm:$0x1]
        %v245 = vld [vmem:[%s222 + $0x54] sm:$0xf]
        %v246 = vld [vmem:[%s222 + $0x58] sm:$0xf]
        %v247 = vld [vmem:[%s222 + $0x5c] sm:$0x1]
        %v248 = vld [vmem:[%s222 + $0x60] sm:$0xf]
        %v249 = vld [vmem:[%s222 + $0x64] sm:$0xf]
        %v250 = vld [vmem:[%s222 + $0x68] sm:$0x1]
        %v251 = vld [vmem:[%s222 + $0x6c] sm:$0xf]
        %v252 = vld [vmem:[%s222 + $0x70] sm:$0xf]
        %v253 = vld [vmem:[%s222 + $0x74] sm:$0x1]
        %v254 = vld [vmem:[%s222 + $0x78] sm:$0xf]
        %v255 = vld [vmem:[%s222 + $0x7c] sm:$0xf]
        %v256 = vld [vmem:[%s222 + $0x80] sm:$0x1]
        %v257 = vld [vmem:[%s222 + $0x84] sm:$0xf]
        %v258 = vld [vmem:[%s222 + $0x88] sm:$0xf]
        %v259 = vld [vmem:[%s222 + $0x8c] sm:$0x1]
        %v260 = vld [vmem:[%s222 + $0x90] sm:$0xf]
        %v261 = vld [vmem:[%s222 + $0x94] sm:$0xf]
        %v262 = vld [vmem:[%s222 + $0x98] sm:$0x1]
        %v263 = vld [vmem:[%s222 + $0x9c] sm:$0xf]
        %v264 = vld [vmem:[%s222 + $0xa0] sm:$0xf]
        %v265 = vld [vmem:[%s222 + $0xa4] sm:$0x1]
        %v266 = vld [vmem:[%s222 + $0xa8] sm:$0xf]
        %v267 = vld [vmem:[%s222 + $0xac] sm:$0xf]
        %v268 = vld [vmem:[%s222 + $0xb0] sm:$0x1]
        %v269 = vld [vmem:[%s222 + $0xb4] sm:$0xf]
        %v270 = vld [vmem:[%s222 + $0xb8] sm:$0xf]
        %v271 = vld [vmem:[%s222 + $0xbc] sm:$0x1]
        %v272 = vld [vmem:[%s222 + $0xc0] sm:$0xf]
        %v273 = vld [vmem:[%s222 + $0xc4] sm:$0xf]
        %v274 = vld [vmem:[%s222 + $0xc8] sm:$0x1]
        %v275 = vld [vmem:[%s222 + $0xcc] sm:$0xf]
        %v276 = vld [vmem:[%s222 + $0xd0] sm:$0xf]
        %v277 = vld [vmem:[%s222 + $0xd4] sm:$0x1]
        %vm278 = vsmask.f32 3328
        %vm279 = vsmask.f32 7440
        %vm280 = vmor %vm278, %vm279
        %v282 = vshrl.u32 %v224, 16
        %v284 = vrot.slane %v282, 4
        %v285 = vshll.u32 %v224, 16
        %v287 = vrot.slane %v285, 5
        %v288 = vor.u32 %v284, %v287
        %v289 = vrot.slane %v288, 4
        %v291 = vshll.u32 %v225, 16
        %v293 = vrot.slane %v291, 5
        %v294 = vsel %vm280, %v289, %v293
        %v295 = vshrl.u32 %v225, 16
        %v297 = vrot.slane %v295, 4
        %v298 = vor.u32 %v297, %v293
        %v299 = vrot.slane %v298, 4
        %v301 = vshll.u32 %v226, 16
        %v303 = vrot.slane %v301, 5
        %v304 = vsel %vm280, %v299, %v303
        %v306 = vshrl.u32 %v227, 16
        %v308 = vrot.slane %v306, 4
        %v309 = vshll.u32 %v227, 16
        %v311 = vrot.slane %v309, 5
        %v312 = vor.u32 %v308, %v311
        %v313 = vrot.slane %v312, 4
        %v315 = vshll.u32 %v228, 16
        %v317 = vrot.slane %v315, 5
        %v318 = vsel %vm280, %v313, %v317
        %v319 = vshrl.u32 %v228, 16
        %v321 = vrot.slane %v319, 4
        %v322 = vor.u32 %v321, %v317
        %v323 = vrot.slane %v322, 4
        %v325 = vshll.u32 %v229, 16
        %v327 = vrot.slane %v325, 5
        %v328 = vsel %vm280, %v323, %v327
        %v330 = vshrl.u32 %v230, 16
        %v332 = vrot.slane %v330, 4
        %v333 = vshll.u32 %v230, 16
        %v335 = vrot.slane %v333, 5
        %v336 = vor.u32 %v332, %v335
        %v337 = vrot.slane %v336, 4
        %v339 = vshll.u32 %v231, 16
        %v341 = vrot.slane %v339, 5
        %v342 = vsel %vm280, %v337, %v341
        %v343 = vshrl.u32 %v231, 16
        %v345 = vrot.slane %v343, 4
        %v346 = vor.u32 %v345, %v341
        %v347 = vrot.slane %v346, 4
        %v349 = vshll.u32 %v232, 16
        %v351 = vrot.slane %v349, 5
        %v352 = vsel %vm280, %v347, %v351
        %v354 = vshrl.u32 %v233, 16
        %v356 = vrot.slane %v354, 4
        %v357 = vshll.u32 %v233, 16
        %v359 = vrot.slane %v357, 5
        %v360 = vor.u32 %v356, %v359
        %v361 = vrot.slane %v360, 4
        %v363 = vshll.u32 %v234, 16
        %v365 = vrot.slane %v363, 5
        %v366 = vsel %vm280, %v361, %v365
        %v367 = vshrl.u32 %v234, 16
        %v369 = vrot.slane %v367, 4
        %v370 = vor.u32 %v369, %v365
        %v371 = vrot.slane %v370, 4
        %v373 = vshll.u32 %v235, 16
        %v375 = vrot.slane %v373, 5
        %v376 = vsel %vm280, %v371, %v375
        %v378 = vshrl.u32 %v236, 16
        %v380 = vrot.slane %v378, 4
        %v381 = vshll.u32 %v236, 16
        %v383 = vrot.slane %v381, 5
        %v384 = vor.u32 %v380, %v383
        %v385 = vrot.slane %v384, 4
        %v387 = vshll.u32 %v237, 16
        %v389 = vrot.slane %v387, 5
        %v390 = vsel %vm280, %v385, %v389
        %v391 = vshrl.u32 %v237, 16
        %v393 = vrot.slane %v391, 4
        %v394 = vor.u32 %v393, %v389
        %v395 = vrot.slane %v394, 4
        %v397 = vshll.u32 %v238, 16
        %v399 = vrot.slane %v397, 5
        %v400 = vsel %vm280, %v395, %v399
        %v402 = vshrl.u32 %v239, 16
        %v404 = vrot.slane %v402, 4
        %v405 = vshll.u32 %v239, 16
        %v407 = vrot.slane %v405, 5
        %v408 = vor.u32 %v404, %v407
        %v409 = vrot.slane %v408, 4
        %v411 = vshll.u32 %v240, 16
        %v413 = vrot.slane %v411, 5
        %v414 = vsel %vm280, %v409, %v413
        %v415 = vshrl.u32 %v240, 16
        %v417 = vrot.slane %v415, 4
        %v418 = vor.u32 %v417, %v413
        %v419 = vrot.slane %v418, 4
        %v421 = vshll.u32 %v241, 16
        %v423 = vrot.slane %v421, 5
        %v424 = vsel %vm280, %v419, %v423
        %v426 = vshrl.u32 %v242, 16
        %v428 = vrot.slane %v426, 4
        %v429 = vshll.u32 %v242, 16
        %v431 = vrot.slane %v429, 5
        %v432 = vor.u32 %v428, %v431
        %v433 = vrot.slane %v432, 4
        %v435 = vshll.u32 %v243, 16
        %v437 = vrot.slane %v435, 5
        %v438 = vsel %vm280, %v433, %v437
        %v439 = vshrl.u32 %v243, 16
        %v441 = vrot.slane %v439, 4
        %v442 = vor.u32 %v441, %v437
        %v443 = vrot.slane %v442, 4
        %v445 = vshll.u32 %v244, 16
        %v447 = vrot.slane %v445, 5
        %v448 = vsel %vm280, %v443, %v447
        %v450 = vshrl.u32 %v245, 16
        %v452 = vrot.slane %v450, 4
        %v453 = vshll.u32 %v245, 16
        %v455 = vrot.slane %v453, 5
        %v456 = vor.u32 %v452, %v455
        %v457 = vrot.slane %v456, 4
        %v459 = vshll.u32 %v246, 16
        %v461 = vrot.slane %v459, 5
        %v462 = vsel %vm280, %v457, %v461
        %v463 = vshrl.u32 %v246, 16
        %v465 = vrot.slane %v463, 4
        %v466 = vor.u32 %v465, %v461
        %v467 = vrot.slane %v466, 4
        %v469 = vshll.u32 %v247, 16
        %v471 = vrot.slane %v469, 5
        %v472 = vsel %vm280, %v467, %v471
        %v474 = vshrl.u32 %v248, 16
        %v476 = vrot.slane %v474, 4
        %v477 = vshll.u32 %v248, 16
        %v479 = vrot.slane %v477, 5
        %v480 = vor.u32 %v476, %v479
        %v481 = vrot.slane %v480, 4
        %v483 = vshll.u32 %v249, 16
        %v485 = vrot.slane %v483, 5
        %v486 = vsel %vm280, %v481, %v485
        %v487 = vshrl.u32 %v249, 16
        %v489 = vrot.slane %v487, 4
        %v490 = vor.u32 %v489, %v485
        %v491 = vrot.slane %v490, 4
        %v493 = vshll.u32 %v250, 16
        %v495 = vrot.slane %v493, 5
        %v496 = vsel %vm280, %v491, %v495
        %v498 = vshrl.u32 %v251, 16
        %v500 = vrot.slane %v498, 4
        %v501 = vshll.u32 %v251, 16
        %v503 = vrot.slane %v501, 5
        %v504 = vor.u32 %v500, %v503
        %v505 = vrot.slane %v504, 4
        %v507 = vshll.u32 %v252, 16
        %v509 = vrot.slane %v507, 5
        %v510 = vsel %vm280, %v505, %v509
        %v511 = vshrl.u32 %v252, 16
        %v513 = vrot.slane %v511, 4
        %v514 = vor.u32 %v513, %v509
        %v515 = vrot.slane %v514, 4
        %v517 = vshll.u32 %v253, 16
        %v519 = vrot.slane %v517, 5
        %v520 = vsel %vm280, %v515, %v519
        %v522 = vshrl.u32 %v254, 16
        %v524 = vrot.slane %v522, 4
        %v525 = vshll.u32 %v254, 16
        %v527 = vrot.slane %v525, 5
        %v528 = vor.u32 %v524, %v527
        %v529 = vrot.slane %v528, 4
        %v531 = vshll.u32 %v255, 16
        %v533 = vrot.slane %v531, 5
        %v534 = vsel %vm280, %v529, %v533
        %v535 = vshrl.u32 %v255, 16
        %v537 = vrot.slane %v535, 4
        %v538 = vor.u32 %v537, %v533
        %v539 = vrot.slane %v538, 4
        %v541 = vshll.u32 %v256, 16
        %v543 = vrot.slane %v541, 5
        %v544 = vsel %vm280, %v539, %v543
        %v546 = vshrl.u32 %v257, 16
        %v548 = vrot.slane %v546, 4
        %v549 = vshll.u32 %v257, 16
        %v551 = vrot.slane %v549, 5
        %v552 = vor.u32 %v548, %v551
        %v553 = vrot.slane %v552, 4
        %v555 = vshll.u32 %v258, 16
        %v557 = vrot.slane %v555, 5
        %v558 = vsel %vm280, %v553, %v557
        %v559 = vshrl.u32 %v258, 16
        %v561 = vrot.slane %v559, 4
        %v562 = vor.u32 %v561, %v557
        %v563 = vrot.slane %v562, 4
        %v565 = vshll.u32 %v259, 16
        %v567 = vrot.slane %v565, 5
        %v568 = vsel %vm280, %v563, %v567
        %v570 = vshrl.u32 %v260, 16
        %v572 = vrot.slane %v570, 4
        %v573 = vshll.u32 %v260, 16
        %v575 = vrot.slane %v573, 5
        %v576 = vor.u32 %v572, %v575
        %v577 = vrot.slane %v576, 4
        %v579 = vshll.u32 %v261, 16
        %v581 = vrot.slane %v579, 5
        %v582 = vsel %vm280, %v577, %v581
        %v583 = vshrl.u32 %v261, 16
        %v585 = vrot.slane %v583, 4
        %v586 = vor.u32 %v585, %v581
        %v587 = vrot.slane %v586, 4
        %v589 = vshll.u32 %v262, 16
        %v591 = vrot.slane %v589, 5
        %v592 = vsel %vm280, %v587, %v591
        %v594 = vshrl.u32 %v263, 16
        %v596 = vrot.slane %v594, 4
        %v597 = vshll.u32 %v263, 16
        %v599 = vrot.slane %v597, 5
        %v600 = vor.u32 %v596, %v599
        %v601 = vrot.slane %v600, 4
        %v603 = vshll.u32 %v264, 16
        %v605 = vrot.slane %v603, 5
        %v606 = vsel %vm280, %v601, %v605
        %v607 = vshrl.u32 %v264, 16
        %v609 = vrot.slane %v607, 4
        %v610 = vor.u32 %v609, %v605
        %v611 = vrot.slane %v610, 4
        %v613 = vshll.u32 %v265, 16
        %v615 = vrot.slane %v613, 5
        %v616 = vsel %vm280, %v611, %v615
        %v618 = vshrl.u32 %v266, 16
        %v620 = vrot.slane %v618, 4
        %v621 = vshll.u32 %v266, 16
        %v623 = vrot.slane %v621, 5
        %v624 = vor.u32 %v620, %v623
        %v625 = vrot.slane %v624, 4
        %v627 = vshll.u32 %v267, 16
        %v629 = vrot.slane %v627, 5
        %v630 = vsel %vm280, %v625, %v629
        %v631 = vshrl.u32 %v267, 16
        %v633 = vrot.slane %v631, 4
        %v634 = vor.u32 %v633, %v629
        %v635 = vrot.slane %v634, 4
        %v637 = vshll.u32 %v268, 16
        %v639 = vrot.slane %v637, 5
        %v640 = vsel %vm280, %v635, %v639
        %v642 = vshrl.u32 %v269, 16
        %v644 = vrot.slane %v642, 4
        %v645 = vshll.u32 %v269, 16
        %v647 = vrot.slane %v645, 5
        %v648 = vor.u32 %v644, %v647
        %v649 = vrot.slane %v648, 4
        %v651 = vshll.u32 %v270, 16
        %v653 = vrot.slane %v651, 5
        %v654 = vsel %vm280, %v649, %v653
        %v655 = vshrl.u32 %v270, 16
        %v657 = vrot.slane %v655, 4
        %v658 = vor.u32 %v657, %v653
        %v659 = vrot.slane %v658, 4
        %v661 = vshll.u32 %v271, 16
        %v663 = vrot.slane %v661, 5
        %v664 = vsel %vm280, %v659, %v663
        %vm713 = vcmask 1042432
        %vm714 = vcmask 1046532
        %vm715 = vmor %vm713, %vm714
        %v716 = vrot.slane %v224, 5
        %v717 = vrot.slane %v716, 4
        %v718 = vrot.slane %v225, 5
        %v719 = vsel %vm715, %v717, %v718
        %v720 = vrot.slane %v718, 4
        %v721 = vrot.slane %v226, 5
        %v722 = vsel %vm715, %v720, %v721
        %v723 = vrot.slane %v227, 5
        %v724 = vrot.slane %v723, 4
        %v725 = vrot.slane %v228, 5
        %v726 = vsel %vm715, %v724, %v725
        %v727 = vrot.slane %v725, 4
        %v728 = vrot.slane %v229, 5
        %v729 = vsel %vm715, %v727, %v728
        %v730 = vrot.slane %v230, 5
        %v731 = vrot.slane %v730, 4
        %v732 = vrot.slane %v231, 5
        %v733 = vsel %vm715, %v731, %v732
        %v734 = vrot.slane %v732, 4
        %v735 = vrot.slane %v232, 5
        %v736 = vsel %vm715, %v734, %v735
        %v737 = vrot.slane %v233, 5
        %v738 = vrot.slane %v737, 4
        %v739 = vrot.slane %v234, 5
        %v740 = vsel %vm715, %v738, %v739
        %v741 = vrot.slane %v739, 4
        %v742 = vrot.slane %v235, 5
        %v743 = vsel %vm715, %v741, %v742
        %v744 = vrot.slane %v236, 5
        %v745 = vrot.slane %v744, 4
        %v746 = vrot.slane %v237, 5
        %v747 = vsel %vm715, %v745, %v746
        %v748 = vrot.slane %v746, 4
        %v749 = vrot.slane %v238, 5
        %v750 = vsel %vm715, %v748, %v749
        %v751 = vrot.slane %v239, 5
        %v752 = vrot.slane %v751, 4
        %v753 = vrot.slane %v240, 5
        %v754 = vsel %vm715, %v752, %v753
        %v755 = vrot.slane %v753, 4
        %v756 = vrot.slane %v241, 5
        %v757 = vsel %vm715, %v755, %v756
        %v758 = vrot.slane %v242, 5
        %v759 = vrot.slane %v758, 4
        %v760 = vrot.slane %v243, 5
        %v761 = vsel %vm715, %v759, %v760
        %v762 = vrot.slane %v760, 4
        %v763 = vrot.slane %v244, 5
        %v764 = vsel %vm715, %v762, %v763
        %v765 = vrot.slane %v245, 5
        %v766 = vrot.slane %v765, 4
        %v767 = vrot.slane %v246, 5
        %v768 = vsel %vm715, %v766, %v767
        %v769 = vrot.slane %v767, 4
        %v770 = vrot.slane %v247, 5
        %v771 = vsel %vm715, %v769, %v770
        %v772 = vrot.slane %v248, 5
        %v773 = vrot.slane %v772, 4
        %v774 = vrot.slane %v249, 5
        %v775 = vsel %vm715, %v773, %v774
        %v776 = vrot.slane %v774, 4
        %v777 = vrot.slane %v250, 5
        %v778 = vsel %vm715, %v776, %v777
        %v779 = vrot.slane %v251, 5
        %v780 = vrot.slane %v779, 4
        %v781 = vrot.slane %v252, 5
        %v782 = vsel %vm715, %v780, %v781
        %v783 = vrot.slane %v781, 4
        %v784 = vrot.slane %v253, 5
        %v785 = vsel %vm715, %v783, %v784
        %v786 = vrot.slane %v254, 5
        %v787 = vrot.slane %v786, 4
        %v788 = vrot.slane %v255, 5
        %v789 = vsel %vm715, %v787, %v788
        %v790 = vrot.slane %v788, 4
        %v791 = vrot.slane %v256, 5
        %v792 = vsel %vm715, %v790, %v791
        %v793 = vrot.slane %v257, 5
        %v794 = vrot.slane %v793, 4
        %v795 = vrot.slane %v258, 5
        %v796 = vsel %vm715, %v794, %v795
        %v797 = vrot.slane %v795, 4
        %v798 = vrot.slane %v259, 5
        %v799 = vsel %vm715, %v797, %v798
        %v800 = vrot.slane %v260, 5
        %v801 = vrot.slane %v800, 4
        %v802 = vrot.slane %v261, 5
        %v803 = vsel %vm715, %v801, %v802
        %v804 = vrot.slane %v802, 4
        %v805 = vrot.slane %v262, 5
        %v806 = vsel %vm715, %v804, %v805
        %v807 = vrot.slane %v263, 5
        %v808 = vrot.slane %v807, 4
        %v809 = vrot.slane %v264, 5
        %v810 = vsel %vm715, %v808, %v809
        %v811 = vrot.slane %v809, 4
        %v812 = vrot.slane %v265, 5
        %v813 = vsel %vm715, %v811, %v812
        %v814 = vrot.slane %v266, 5
        %v815 = vrot.slane %v814, 4
        %v816 = vrot.slane %v267, 5
        %v817 = vsel %vm715, %v815, %v816
        %v818 = vrot.slane %v816, 4
        %v819 = vrot.slane %v268, 5
        %v820 = vsel %vm715, %v818, %v819
        %v821 = vrot.slane %v269, 5
        %v822 = vrot.slane %v821, 4
        %v823 = vrot.slane %v270, 5
        %v824 = vsel %vm715, %v822, %v823
        %v825 = vrot.slane %v823, 4
        %v826 = vrot.slane %v271, 5
        %v827 = vsel %vm715, %v825, %v826
        %v829 = vshrl.u32 %v272, 16
        %v831 = vrot.slane %v829, 4
        %v832 = vshll.u32 %v272, 16
        %v834 = vrot.slane %v832, 5
        %v835 = vor.u32 %v831, %v834
        %v836 = vrot.slane %v835, 4
        %v838 = vshll.u32 %v273, 16
        %v840 = vrot.slane %v838, 5
        %v841 = vsel %vm280, %v836, %v840
        %v842 = vshrl.u32 %v273, 16
        %v844 = vrot.slane %v842, 4
        %v845 = vor.u32 %v844, %v840
        %v846 = vrot.slane %v845, 4
        %v848 = vshll.u32 %v274, 16
        %v850 = vrot.slane %v848, 5
        %v851 = vsel %vm280, %v846, %v850
        %v855 = vrot.slane %v272, 5
        %v856 = vrot.slane %v855, 4
        %v857 = vrot.slane %v273, 5
        %v858 = vsel %vm715, %v856, %v857
        %v859 = vrot.slane %v857, 4
        %v860 = vrot.slane %v274, 5
        %v861 = vsel %vm715, %v859, %v860
        %v863 = vshrl.u32 %v275, 16
        %v865 = vrot.slane %v863, 4
        %v866 = vshll.u32 %v275, 16
        %v868 = vrot.slane %v866, 5
        %v869 = vor.u32 %v865, %v868
        %v870 = vrot.slane %v869, 4
        %v872 = vshll.u32 %v276, 16
        %v874 = vrot.slane %v872, 5
        %v875 = vsel %vm280, %v870, %v874
        %v876 = vshrl.u32 %v276, 16
        %v878 = vrot.slane %v876, 4
        %v879 = vor.u32 %v878, %v874
        %v880 = vrot.slane %v879, 4
        %v882 = vshll.u32 %v277, 16
        %v884 = vrot.slane %v882, 5
        %v885 = vsel %vm280, %v880, %v884
        %v889 = vrot.slane %v275, 5
        %v890 = vrot.slane %v889, 4
        %v891 = vrot.slane %v276, 5
        %v892 = vsel %vm715, %v890, %v891
        %v893 = vrot.slane %v891, 4
        %v894 = vrot.slane %v277, 5
        %v895 = vsel %vm715, %v893, %v894
        %v896 = vunpack.c.l.b16 %v224
        %v897 = vunpack.c.l.b16 %v225
        %v898 = vunpack.c.l.b16 %v227
        %v899 = vunpack.c.l.b16 %v228
        %v900 = vunpack.c.l.b16 %v230
        %v901 = vunpack.c.l.b16 %v231
        %v902 = vunpack.c.l.b16 %v233
        %v903 = vunpack.c.l.b16 %v234
        %v904 = vunpack.c.l.b16 %v236
        %v905 = vunpack.c.l.b16 %v237
        %v906 = vunpack.c.l.b16 %v239
        %v907 = vunpack.c.l.b16 %v240
        %v908 = vunpack.c.l.b16 %v242
        %v909 = vunpack.c.l.b16 %v243
        %v910 = vunpack.c.l.b16 %v245
        %v911 = vunpack.c.l.b16 %v246
        %v912 = vunpack.c.l.b16 %v248
        %v913 = vunpack.c.l.b16 %v249
        %v914 = vunpack.c.l.b16 %v251
        %v915 = vunpack.c.l.b16 %v252
        %v916 = vunpack.c.l.b16 %v254
        %v917 = vunpack.c.l.b16 %v255
        %v918 = vunpack.c.l.b16 %v257
        %v919 = vunpack.c.l.b16 %v258
        %v920 = vunpack.c.l.b16 %v260
        %v921 = vunpack.c.l.b16 %v261
        %v922 = vunpack.c.l.b16 %v263
        %v923 = vunpack.c.l.b16 %v264
        %v924 = vunpack.c.l.b16 %v266
        %v925 = vunpack.c.l.b16 %v267
        %v926 = vunpack.c.l.b16 %v269
        %v927 = vunpack.c.l.b16 %v270
        %v928 = vpack.c.b16 %v897, %v896
        %v929 = vpack.c.b16 %v899, %v898
        %v930 = vpack.c.b16 %v901, %v900
        %v931 = vpack.c.b16 %v903, %v902
        %v932 = vpack.c.b16 %v905, %v904
        %v933 = vpack.c.b16 %v907, %v906
        %v934 = vpack.c.b16 %v909, %v908
        %v935 = vpack.c.b16 %v911, %v910
        %v936 = vpack.c.b16 %v913, %v912
        %v937 = vpack.c.b16 %v915, %v914
        %v938 = vpack.c.b16 %v917, %v916
        %v939 = vpack.c.b16 %v919, %v918
        %v940 = vpack.c.b16 %v921, %v920
        %v941 = vpack.c.b16 %v923, %v922
        %v942 = vpack.c.b16 %v925, %v924
        %v943 = vpack.c.b16 %v927, %v926
        %v944 = vunpack.c.l.b16 %v294
        %v945 = vunpack.c.l.b16 %v304
        %v946 = vunpack.c.l.b16 %v318
        %v947 = vunpack.c.l.b16 %v328
        %v948 = vunpack.c.l.b16 %v342
        %v949 = vunpack.c.l.b16 %v352
        %v950 = vunpack.c.l.b16 %v366
        %v951 = vunpack.c.l.b16 %v376
        %v952 = vunpack.c.l.b16 %v390
        %v953 = vunpack.c.l.b16 %v400
        %v954 = vunpack.c.l.b16 %v414
        %v955 = vunpack.c.l.b16 %v424
        %v956 = vunpack.c.l.b16 %v438
        %v957 = vunpack.c.l.b16 %v448
        %v958 = vunpack.c.l.b16 %v462
        %v959 = vunpack.c.l.b16 %v472
        %v960 = vunpack.c.l.b16 %v486
        %v961 = vunpack.c.l.b16 %v496
        %v962 = vunpack.c.l.b16 %v510
        %v963 = vunpack.c.l.b16 %v520
        %v964 = vunpack.c.l.b16 %v534
        %v965 = vunpack.c.l.b16 %v544
        %v966 = vunpack.c.l.b16 %v558
        %v967 = vunpack.c.l.b16 %v568
        %v968 = vunpack.c.l.b16 %v582
        %v969 = vunpack.c.l.b16 %v592
        %v970 = vunpack.c.l.b16 %v606
        %v971 = vunpack.c.l.b16 %v616
        %v972 = vunpack.c.l.b16 %v630
        %v973 = vunpack.c.l.b16 %v640
        %v974 = vunpack.c.l.b16 %v654
        %v975 = vunpack.c.l.b16 %v664
        %v976 = vpack.c.b16 %v945, %v944
        %v977 = vpack.c.b16 %v947, %v946
        %v978 = vpack.c.b16 %v949, %v948
        %v979 = vpack.c.b16 %v951, %v950
        %v980 = vpack.c.b16 %v953, %v952
        %v981 = vpack.c.b16 %v955, %v954
        %v982 = vpack.c.b16 %v957, %v956
        %v983 = vpack.c.b16 %v959, %v958
        %v984 = vpack.c.b16 %v961, %v960
        %v985 = vpack.c.b16 %v963, %v962
        %v986 = vpack.c.b16 %v965, %v964
        %v987 = vpack.c.b16 %v967, %v966
        %v988 = vpack.c.b16 %v969, %v968
        %v989 = vpack.c.b16 %v971, %v970
        %v990 = vpack.c.b16 %v973, %v972
        %v991 = vpack.c.b16 %v975, %v974
        %992 = vrot.lane.b32.xlu0 %v976, 16
        %v993 = vpop.permute.xlu0 %992
        %994 = vrot.lane.b32.xlu0 %v977, 16
        %v995 = vpop.permute.xlu0 %994
        %996 = vrot.lane.b32.xlu0 %v978, 16
        %v997 = vpop.permute.xlu0 %996
        %998 = vrot.lane.b32.xlu0 %v979, 16
        %v999 = vpop.permute.xlu0 %998
        %1000 = vrot.lane.b32.xlu0 %v980, 16
        %v1001 = vpop.permute.xlu0 %1000
        %1002 = vrot.lane.b32.xlu0 %v981, 16
        %v1003 = vpop.permute.xlu0 %1002
        %1004 = vrot.lane.b32.xlu0 %v982, 16
        %v1005 = vpop.permute.xlu0 %1004
        %1006 = vrot.lane.b32.xlu0 %v983, 16
        %v1007 = vpop.permute.xlu0 %1006
        %1008 = vrot.lane.b32.xlu0 %v984, 16
        %v1009 = vpop.permute.xlu0 %1008
        %1010 = vrot.lane.b32.xlu0 %v985, 16
        %v1011 = vpop.permute.xlu0 %1010
        %1012 = vrot.lane.b32.xlu0 %v986, 16
        %v1013 = vpop.permute.xlu0 %1012
        %1014 = vrot.lane.b32.xlu0 %v987, 16
        %v1015 = vpop.permute.xlu0 %1014
        %1016 = vrot.lane.b32.xlu0 %v988, 16
        %v1017 = vpop.permute.xlu0 %1016
        %1018 = vrot.lane.b32.xlu0 %v989, 16
        %v1019 = vpop.permute.xlu0 %1018
        %1020 = vrot.lane.b32.xlu0 %v990, 16
        %v1021 = vpop.permute.xlu0 %1020
        %1022 = vrot.lane.b32.xlu0 %v991, 16
        %v1023 = vpop.permute.xlu0 %1022
        %v1024 = vunpack.c.l.b16 %v719
        %v1025 = vunpack.c.l.b16 %v722
        %v1026 = vunpack.c.l.b16 %v726
        %v1027 = vunpack.c.l.b16 %v729
        %v1028 = vunpack.c.l.b16 %v733
        %v1029 = vunpack.c.l.b16 %v736
        %v1030 = vunpack.c.l.b16 %v740
        %v1031 = vunpack.c.l.b16 %v743
        %v1032 = vunpack.c.l.b16 %v747
        %v1033 = vunpack.c.l.b16 %v750
        %v1034 = vunpack.c.l.b16 %v754
        %v1035 = vunpack.c.l.b16 %v757
        %v1036 = vunpack.c.l.b16 %v761
        %v1037 = vunpack.c.l.b16 %v764
        %v1038 = vunpack.c.l.b16 %v768
        %v1039 = vunpack.c.l.b16 %v771
        %v1040 = vunpack.c.l.b16 %v775
        %v1041 = vunpack.c.l.b16 %v778
        %v1042 = vunpack.c.l.b16 %v782
        %v1043 = vunpack.c.l.b16 %v785
        %v1044 = vunpack.c.l.b16 %v789
        %v1045 = vunpack.c.l.b16 %v792
        %v1046 = vunpack.c.l.b16 %v796
        %v1047 = vunpack.c.l.b16 %v799
        %v1048 = vunpack.c.l.b16 %v803
        %v1049 = vunpack.c.l.b16 %v806
        %v1050 = vunpack.c.l.b16 %v810
        %v1051 = vunpack.c.l.b16 %v813
        %v1052 = vunpack.c.l.b16 %v817
        %v1053 = vunpack.c.l.b16 %v820
        %v1054 = vunpack.c.l.b16 %v824
        %v1055 = vunpack.c.l.b16 %v827
        %v1056 = vpack.c.b16 %v1025, %v1024
        %v1057 = vpack.c.b16 %v1027, %v1026
        %v1058 = vpack.c.b16 %v1029, %v1028
        %v1059 = vpack.c.b16 %v1031, %v1030
        %v1060 = vpack.c.b16 %v1033, %v1032
        %v1061 = vpack.c.b16 %v1035, %v1034
        %v1062 = vpack.c.b16 %v1037, %v1036
        %v1063 = vpack.c.b16 %v1039, %v1038
        %v1064 = vpack.c.b16 %v1041, %v1040
        %v1065 = vpack.c.b16 %v1043, %v1042
        %v1066 = vpack.c.b16 %v1045, %v1044
        %v1067 = vpack.c.b16 %v1047, %v1046
        %v1068 = vpack.c.b16 %v1049, %v1048
        %v1069 = vpack.c.b16 %v1051, %v1050
        %v1070 = vpack.c.b16 %v1053, %v1052
        %v1071 = vpack.c.b16 %v1055, %v1054
        %1072 = vrot.lane.b32.xlu0 %v1056, 32
        %v1073 = vpop.permute.xlu0 %1072
        %1074 = vrot.lane.b32.xlu0 %v1057, 32
        %v1075 = vpop.permute.xlu0 %1074
        %1076 = vrot.lane.b32.xlu0 %v1058, 32
        %v1077 = vpop.permute.xlu0 %1076
        %1078 = vrot.lane.b32.xlu0 %v1059, 32
        %v1079 = vpop.permute.xlu0 %1078
        %1080 = vrot.lane.b32.xlu0 %v1060, 32
        %v1081 = vpop.permute.xlu0 %1080
        %1082 = vrot.lane.b32.xlu0 %v1061, 32
        %v1083 = vpop.permute.xlu0 %1082
        %1084 = vrot.lane.b32.xlu0 %v1062, 32
        %v1085 = vpop.permute.xlu0 %1084
        %1086 = vrot.lane.b32.xlu0 %v1063, 32
        %v1087 = vpop.permute.xlu0 %1086
        %1088 = vrot.lane.b32.xlu0 %v1064, 32
        %v1089 = vpop.permute.xlu0 %1088
        %1090 = vrot.lane.b32.xlu0 %v1065, 32
        %v1091 = vpop.permute.xlu0 %1090
        %1092 = vrot.lane.b32.xlu0 %v1066, 32
        %v1093 = vpop.permute.xlu0 %1092
        %1094 = vrot.lane.b32.xlu0 %v1067, 32
        %v1095 = vpop.permute.xlu0 %1094
        %1096 = vrot.lane.b32.xlu0 %v1068, 32
        %v1097 = vpop.permute.xlu0 %1096
        %1098 = vrot.lane.b32.xlu0 %v1069, 32
        %v1099 = vpop.permute.xlu0 %1098
        %1100 = vrot.lane.b32.xlu0 %v1070, 32
        %v1101 = vpop.permute.xlu0 %1100
        %1102 = vrot.lane.b32.xlu0 %v1071, 32
        %v1103 = vpop.permute.xlu0 %1102
        %v1104 = vunpack.c.l.b16 %v272
        %v1105 = vunpack.c.l.b16 %v273
        %v1106 = vpack.c.b16 %v1105, %v1104
        %1107 = vrot.lane.b32.xlu0 %v929, 48
        %v1108 = vpop.permute.xlu0 %1107
        %1109 = vrot.lane.b32.xlu0 %v930, 48
        %v1110 = vpop.permute.xlu0 %1109
        %1111 = vrot.lane.b32.xlu0 %v931, 48
        %v1112 = vpop.permute.xlu0 %1111
        %1113 = vrot.lane.b32.xlu0 %v932, 48
        %v1114 = vpop.permute.xlu0 %1113
        %1115 = vrot.lane.b32.xlu0 %v933, 48
        %v1116 = vpop.permute.xlu0 %1115
        %1117 = vrot.lane.b32.xlu0 %v934, 48
        %v1118 = vpop.permute.xlu0 %1117
        %1119 = vrot.lane.b32.xlu0 %v935, 48
        %v1120 = vpop.permute.xlu0 %1119
        %1121 = vrot.lane.b32.xlu0 %v936, 48
        %v1122 = vpop.permute.xlu0 %1121
        %1123 = vrot.lane.b32.xlu0 %v937, 48
        %v1124 = vpop.permute.xlu0 %1123
        %1125 = vrot.lane.b32.xlu0 %v938, 48
        %v1126 = vpop.permute.xlu0 %1125
        %1127 = vrot.lane.b32.xlu0 %v939, 48
        %v1128 = vpop.permute.xlu0 %1127
        %1129 = vrot.lane.b32.xlu0 %v940, 48
        %v1130 = vpop.permute.xlu0 %1129
        %1131 = vrot.lane.b32.xlu0 %v941, 48
        %v1132 = vpop.permute.xlu0 %1131
        %1133 = vrot.lane.b32.xlu0 %v942, 48
        %v1134 = vpop.permute.xlu0 %1133
        %1135 = vrot.lane.b32.xlu0 %v943, 48
        %v1136 = vpop.permute.xlu0 %1135
        %1137 = vrot.lane.b32.xlu0 %v1106, 48
        %v1138 = vpop.permute.xlu0 %1137
        %v1139 = vunpack.c.l.b16 %v841
        %v1140 = vunpack.c.l.b16 %v851
        %v1141 = vpack.c.b16 %v1140, %v1139
        %1142 = vrot.lane.b32.xlu0 %v977, 64
        %v1143 = vpop.permute.xlu0 %1142
        %1144 = vrot.lane.b32.xlu0 %v978, 64
        %v1145 = vpop.permute.xlu0 %1144
        %1146 = vrot.lane.b32.xlu0 %v979, 64
        %v1147 = vpop.permute.xlu0 %1146
        %1148 = vrot.lane.b32.xlu0 %v980, 64
        %v1149 = vpop.permute.xlu0 %1148
        %1150 = vrot.lane.b32.xlu0 %v981, 64
        %v1151 = vpop.permute.xlu0 %1150
        %1152 = vrot.lane.b32.xlu0 %v982, 64
        %v1153 = vpop.permute.xlu0 %1152
        %1154 = vrot.lane.b32.xlu0 %v983, 64
        %v1155 = vpop.permute.xlu0 %1154
        %1156 = vrot.lane.b32.xlu0 %v984, 64
        %v1157 = vpop.permute.xlu0 %1156
        %1158 = vrot.lane.b32.xlu0 %v985, 64
        %v1159 = vpop.permute.xlu0 %1158
        %1160 = vrot.lane.b32.xlu0 %v986, 64
        %v1161 = vpop.permute.xlu0 %1160
        %1162 = vrot.lane.b32.xlu0 %v987, 64
        %v1163 = vpop.permute.xlu0 %1162
        %1164 = vrot.lane.b32.xlu0 %v988, 64
        %v1165 = vpop.permute.xlu0 %1164
        %1166 = vrot.lane.b32.xlu0 %v989, 64
        %v1167 = vpop.permute.xlu0 %1166
        %1168 = vrot.lane.b32.xlu0 %v990, 64
        %v1169 = vpop.permute.xlu0 %1168
        %1170 = vrot.lane.b32.xlu0 %v991, 64
        %v1171 = vpop.permute.xlu0 %1170
        %1172 = vrot.lane.b32.xlu0 %v1141, 64
        %v1173 = vpop.permute.xlu0 %1172
        %v1174 = vunpack.c.l.b16 %v858
        %v1175 = vunpack.c.l.b16 %v861
        %v1176 = vpack.c.b16 %v1175, %v1174
        %1177 = vrot.lane.b32.xlu0 %v1057, 80
        %v1178 = vpop.permute.xlu0 %1177
        %1179 = vrot.lane.b32.xlu0 %v1058, 80
        %v1180 = vpop.permute.xlu0 %1179
        %1181 = vrot.lane.b32.xlu0 %v1059, 80
        %v1182 = vpop.permute.xlu0 %1181
        %1183 = vrot.lane.b32.xlu0 %v1060, 80
        %v1184 = vpop.permute.xlu0 %1183
        %1185 = vrot.lane.b32.xlu0 %v1061, 80
        %v1186 = vpop.permute.xlu0 %1185
        %1187 = vrot.lane.b32.xlu0 %v1062, 80
        %v1188 = vpop.permute.xlu0 %1187
        %1189 = vrot.lane.b32.xlu0 %v1063, 80
        %v1190 = vpop.permute.xlu0 %1189
        %1191 = vrot.lane.b32.xlu0 %v1064, 80
        %v1192 = vpop.permute.xlu0 %1191
        %1193 = vrot.lane.b32.xlu0 %v1065, 80
        %v1194 = vpop.permute.xlu0 %1193
        %1195 = vrot.lane.b32.xlu0 %v1066, 80
        %v1196 = vpop.permute.xlu0 %1195
        %1197 = vrot.lane.b32.xlu0 %v1067, 80
        %v1198 = vpop.permute.xlu0 %1197
        %1199 = vrot.lane.b32.xlu0 %v1068, 80
        %v1200 = vpop.permute.xlu0 %1199
        %1201 = vrot.lane.b32.xlu0 %v1069, 80
        %v1202 = vpop.permute.xlu0 %1201
        %1203 = vrot.lane.b32.xlu0 %v1070, 80
        %v1204 = vpop.permute.xlu0 %1203
        %1205 = vrot.lane.b32.xlu0 %v1071, 80
        %v1206 = vpop.permute.xlu0 %1205
        %1207 = vrot.lane.b32.xlu0 %v1176, 80
        %v1208 = vpop.permute.xlu0 %1207
        %v1209 = vunpack.c.l.b16 %v275
        %v1210 = vunpack.c.l.b16 %v276
        %v1211 = vpack.c.b16 %v1210, %v1209
        %1212 = vrot.lane.b32.xlu0 %v930, 96
        %v1213 = vpop.permute.xlu0 %1212
        %1214 = vrot.lane.b32.xlu0 %v931, 96
        %v1215 = vpop.permute.xlu0 %1214
        %1216 = vrot.lane.b32.xlu0 %v932, 96
        %v1217 = vpop.permute.xlu0 %1216
        %1218 = vrot.lane.b32.xlu0 %v933, 96
        %v1219 = vpop.permute.xlu0 %1218
        %1220 = vrot.lane.b32.xlu0 %v934, 96
        %v1221 = vpop.permute.xlu0 %1220
        %1222 = vrot.lane.b32.xlu0 %v935, 96
        %v1223 = vpop.permute.xlu0 %1222
        %1224 = vrot.lane.b32.xlu0 %v936, 96
        %v1225 = vpop.permute.xlu0 %1224
        %1226 = vrot.lane.b32.xlu0 %v937, 96
        %v1227 = vpop.permute.xlu0 %1226
        %1228 = vrot.lane.b32.xlu0 %v938, 96
        %v1229 = vpop.permute.xlu0 %1228
        %1230 = vrot.lane.b32.xlu0 %v939, 96
        %v1231 = vpop.permute.xlu0 %1230
        %1232 = vrot.lane.b32.xlu0 %v940, 96
        %v1233 = vpop.permute.xlu0 %1232
        %1234 = vrot.lane.b32.xlu0 %v941, 96
        %v1235 = vpop.permute.xlu0 %1234
        %1236 = vrot.lane.b32.xlu0 %v942, 96
        %v1237 = vpop.permute.xlu0 %1236
        %1238 = vrot.lane.b32.xlu0 %v943, 96
        %v1239 = vpop.permute.xlu0 %1238
        %1240 = vrot.lane.b32.xlu0 %v1106, 96
        %v1241 = vpop.permute.xlu0 %1240
        %1242 = vrot.lane.b32.xlu0 %v1211, 96
        %v1243 = vpop.permute.xlu0 %1242
        %v1244 = vunpack.c.l.b16 %v875
        %v1245 = vunpack.c.l.b16 %v885
        %v1246 = vpack.c.b16 %v1245, %v1244
        %1247 = vrot.lane.b32.xlu0 %v978, 112
        %v1248 = vpop.permute.xlu0 %1247
        %1249 = vrot.lane.b32.xlu0 %v979, 112
        %v1250 = vpop.permute.xlu0 %1249
        %1251 = vrot.lane.b32.xlu0 %v980, 112
        %v1252 = vpop.permute.xlu0 %1251
        %1253 = vrot.lane.b32.xlu0 %v981, 112
        %v1254 = vpop.permute.xlu0 %1253
        %1255 = vrot.lane.b32.xlu0 %v982, 112
        %v1256 = vpop.permute.xlu0 %1255
        %1257 = vrot.lane.b32.xlu0 %v983, 112
        %v1258 = vpop.permute.xlu0 %1257
        %1259 = vrot.lane.b32.xlu0 %v984, 112
        %v1260 = vpop.permute.xlu0 %1259
        %1261 = vrot.lane.b32.xlu0 %v985, 112
        %v1262 = vpop.permute.xlu0 %1261
        %1263 = vrot.lane.b32.xlu0 %v986, 112
        %v1264 = vpop.permute.xlu0 %1263
        %1265 = vrot.lane.b32.xlu0 %v987, 112
        %v1266 = vpop.permute.xlu0 %1265
        %1267 = vrot.lane.b32.xlu0 %v988, 112
        %v1268 = vpop.permute.xlu0 %1267
        %1269 = vrot.lane.b32.xlu0 %v989, 112
        %v1270 = vpop.permute.xlu0 %1269
        %1271 = vrot.lane.b32.xlu0 %v990, 112
        %v1272 = vpop.permute.xlu0 %1271
        %1273 = vrot.lane.b32.xlu0 %v991, 112
        %v1274 = vpop.permute.xlu0 %1273
        %1275 = vrot.lane.b32.xlu0 %v1141, 112
        %v1276 = vpop.permute.xlu0 %1275
        %1277 = vrot.lane.b32.xlu0 %v1246, 112
        %v1278 = vpop.permute.xlu0 %1277
        %v1279 = vunpack.c.l.b16 %v892
        %v1280 = vunpack.c.l.b16 %v895
        %v1281 = vpack.c.b16 %v1280, %v1279
        %vm1282 = vcmask 130048
        %v1285 = vsel %vm1282, %v928, %v993
        %v1288 = vsel %vm1282, %v929, %v995
        %v1291 = vsel %vm1282, %v930, %v997
        %v1294 = vsel %vm1282, %v931, %v999
        %v1297 = vsel %vm1282, %v932, %v1001
        %v1300 = vsel %vm1282, %v933, %v1003
        %v1303 = vsel %vm1282, %v934, %v1005
        %v1306 = vsel %vm1282, %v935, %v1007
        %v1309 = vsel %vm1282, %v936, %v1009
        %v1312 = vsel %vm1282, %v937, %v1011
        %v1315 = vsel %vm1282, %v938, %v1013
        %v1318 = vsel %vm1282, %v939, %v1015
        %v1321 = vsel %vm1282, %v940, %v1017
        %v1324 = vsel %vm1282, %v941, %v1019
        %v1327 = vsel %vm1282, %v942, %v1021
        %v1330 = vsel %vm1282, %v943, %v1023
        %vm1331 = vcmask 261120
        %v1333 = vsel %vm1331, %v1285, %v1073
        %v1335 = vsel %vm1331, %v1288, %v1075
        %v1337 = vsel %vm1331, %v1291, %v1077
        %v1339 = vsel %vm1331, %v1294, %v1079
        %v1341 = vsel %vm1331, %v1297, %v1081
        %v1343 = vsel %vm1331, %v1300, %v1083
        %v1345 = vsel %vm1331, %v1303, %v1085
        %v1347 = vsel %vm1331, %v1306, %v1087
        %v1349 = vsel %vm1331, %v1309, %v1089
        %v1351 = vsel %vm1331, %v1312, %v1091
        %v1353 = vsel %vm1331, %v1315, %v1093
        %v1355 = vsel %vm1331, %v1318, %v1095
        %v1357 = vsel %vm1331, %v1321, %v1097
        %v1359 = vsel %vm1331, %v1324, %v1099
        %v1361 = vsel %vm1331, %v1327, %v1101
        %v1363 = vsel %vm1331, %v1330, %v1103
        %vm1364 = vcmask 392192
        %v1366 = vsel %vm1364, %v1333, %v1108
        %v1368 = vsel %vm1364, %v1335, %v1110
        %v1370 = vsel %vm1364, %v1337, %v1112
        %v1372 = vsel %vm1364, %v1339, %v1114
        %v1374 = vsel %vm1364, %v1341, %v1116
        %v1376 = vsel %vm1364, %v1343, %v1118
        %v1378 = vsel %vm1364, %v1345, %v1120
        %v1380 = vsel %vm1364, %v1347, %v1122
        %v1382 = vsel %vm1364, %v1349, %v1124
        %v1384 = vsel %vm1364, %v1351, %v1126
        %v1386 = vsel %vm1364, %v1353, %v1128
        %v1388 = vsel %vm1364, %v1355, %v1130
        %v1390 = vsel %vm1364, %v1357, %v1132
        %v1392 = vsel %vm1364, %v1359, %v1134
        %v1394 = vsel %vm1364, %v1361, %v1136
        %v1396 = vsel %vm1364, %v1363, %v1138
        %vm1397 = vcmask 523264
        %v1399 = vsel %vm1397, %v1366, %v1143
        %v1401 = vsel %vm1397, %v1368, %v1145
        %v1403 = vsel %vm1397, %v1370, %v1147
        %v1405 = vsel %vm1397, %v1372, %v1149
        %v1407 = vsel %vm1397, %v1374, %v1151
        %v1409 = vsel %vm1397, %v1376, %v1153
        %v1411 = vsel %vm1397, %v1378, %v1155
        %v1413 = vsel %vm1397, %v1380, %v1157
        %v1415 = vsel %vm1397, %v1382, %v1159
        %v1417 = vsel %vm1397, %v1384, %v1161
        %v1419 = vsel %vm1397, %v1386, %v1163
        %v1421 = vsel %vm1397, %v1388, %v1165
        %v1423 = vsel %vm1397, %v1390, %v1167
        %v1425 = vsel %vm1397, %v1392, %v1169
        %v1427 = vsel %vm1397, %v1394, %v1171
        %v1429 = vsel %vm1397, %v1396, %v1173
        %vm1430 = vcmask 654336
        %v1432 = vsel %vm1430, %v1399, %v1178
        %v1434 = vsel %vm1430, %v1401, %v1180
        %v1436 = vsel %vm1430, %v1403, %v1182
        %v1438 = vsel %vm1430, %v1405, %v1184
        %v1440 = vsel %vm1430, %v1407, %v1186
        %v1442 = vsel %vm1430, %v1409, %v1188
        %v1444 = vsel %vm1430, %v1411, %v1190
        %v1446 = vsel %vm1430, %v1413, %v1192
        %v1448 = vsel %vm1430, %v1415, %v1194
        %v1450 = vsel %vm1430, %v1417, %v1196
        %v1452 = vsel %vm1430, %v1419, %v1198
        %v1454 = vsel %vm1430, %v1421, %v1200
        %v1456 = vsel %vm1430, %v1423, %v1202
        %v1458 = vsel %vm1430, %v1425, %v1204
        %v1460 = vsel %vm1430, %v1427, %v1206
        %v1462 = vsel %vm1430, %v1429, %v1208
        %vm1463 = vcmask 785408
        %v1465 = vsel %vm1463, %v1432, %v1213
        %v1467 = vsel %vm1463, %v1434, %v1215
        %v1469 = vsel %vm1463, %v1436, %v1217
        %v1471 = vsel %vm1463, %v1438, %v1219
        %v1473 = vsel %vm1463, %v1440, %v1221
        %v1475 = vsel %vm1463, %v1442, %v1223
        %v1477 = vsel %vm1463, %v1444, %v1225
        %v1479 = vsel %vm1463, %v1446, %v1227
        %v1481 = vsel %vm1463, %v1448, %v1229
        %v1483 = vsel %vm1463, %v1450, %v1231
        %v1485 = vsel %vm1463, %v1452, %v1233
        %v1487 = vsel %vm1463, %v1454, %v1235
        %v1489 = vsel %vm1463, %v1456, %v1237
        %v1491 = vsel %vm1463, %v1458, %v1239
        %v1493 = vsel %vm1463, %v1460, %v1241
        %v1495 = vsel %vm1463, %v1462, %v1243
        %vm1496 = vcmask 916480
        %v1498 = vsel %vm1496, %v1465, %v1248
        %v1501 = vsel %vm1496, %v1467, %v1250
        %v1504 = vsel %vm1496, %v1469, %v1252
        %v1507 = vsel %vm1496, %v1471, %v1254
        %v1510 = vsel %vm1496, %v1473, %v1256
        %v1513 = vsel %vm1496, %v1475, %v1258
        %v1516 = vsel %vm1496, %v1477, %v1260
        %v1519 = vsel %vm1496, %v1479, %v1262
        %v1522 = vsel %vm1496, %v1481, %v1264
        %v1525 = vsel %vm1496, %v1483, %v1266
        %v1528 = vsel %vm1496, %v1485, %v1268
        %v1531 = vsel %vm1496, %v1487, %v1270
        %v1534 = vsel %vm1496, %v1489, %v1272
        %v1537 = vsel %vm1496, %v1491, %v1274
        %v1540 = vsel %vm1496, %v1493, %v1276
        %v1543 = vsel %vm1496, %v1495, %v1278
        %v1545 = vld [vmem:[%s1] sm:$0xf]
        %v1546 = vld [vmem:[%s1 + $0x4] sm:$0xf]
        %v1547 = vld [vmem:[%s1 + $0x8] sm:$0xf]
        %v1548 = vld [vmem:[%s1 + $0xc] sm:$0xf]
        %v1549 = vld [vmem:[%s1 + $0x10] sm:$0xf]
        %v1550 = vld [vmem:[%s1 + $0x14] sm:$0xf]
        %v1551 = vld [vmem:[%s1 + $0x18] sm:$0xf]
        %v1552 = vld [vmem:[%s1 + $0x1c] sm:$0xf]
        %v1553 = vld [vmem:[%s1 + $0x20] sm:$0xf]
        %v1554 = vld [vmem:[%s1 + $0x24] sm:$0xf]
        %v1555 = vld [vmem:[%s1 + $0x28] sm:$0xf]
        %v1556 = vld [vmem:[%s1 + $0x2c] sm:$0xf]
        %v1557 = vld [vmem:[%s1 + $0x30] sm:$0xf]
        %v1558 = vld [vmem:[%s1 + $0x34] sm:$0xf]
        %v1559 = vld [vmem:[%s1 + $0x38] sm:$0xf]
        %v1560 = vld [vmem:[%s1 + $0x3c] sm:$0xf]
        %v1561 = vld [vmem:[%s1 + $0x40] sm:$0xf]
        %v1562 = vld [vmem:[%s1 + $0x44] sm:$0xf]
        %v1563 = vld [vmem:[%s2] sm:$0x1]
        %v1565 = vlaneseq
        %v1566 = vshrl.u32 %v1565, 7
        %v1567 = vsub.s32 0, %v1566
        %v1568 = vrot.slane %v1563, %v1567
        %v1588 = vunpack.c.l.b16 %v1545
        %v1589 = vunpack.c.l.b16 %v1546
        %v1590 = vunpack.c.l.b16 %v1547
        %v1591 = vunpack.c.l.b16 %v1548
        %v1592 = vunpack.c.l.b16 %v1549
        %v1593 = vunpack.c.l.b16 %v1550
        %v1594 = vunpack.c.l.b16 %v1551
        %v1595 = vunpack.c.l.b16 %v1552
        %v1596 = vunpack.c.l.b16 %v1553
        %v1597 = vunpack.c.l.b16 %v1554
        %v1598 = vunpack.c.l.b16 %v1555
        %v1599 = vunpack.c.l.b16 %v1556
        %v1600 = vunpack.c.l.b16 %v1557
        %v1601 = vunpack.c.l.b16 %v1558
        %v1602 = vunpack.c.l.b16 %v1559
        %v1603 = vunpack.c.l.b16 %v1560
        %v1604 = vunpack.c.l.b16 %v1561
        %v1605 = vunpack.c.l.b16 %v1562
        %v1606 = vpack.c.b16 %v1589, %v1588
        %v1607 = vpack.c.b16 %v1591, %v1590
        %v1608 = vpack.c.b16 %v1593, %v1592
        %v1609 = vpack.c.b16 %v1595, %v1594
        %v1610 = vpack.c.b16 %v1597, %v1596
        %v1611 = vpack.c.b16 %v1599, %v1598
        %v1612 = vpack.c.b16 %v1601, %v1600
        %v1613 = vpack.c.b16 %v1603, %v1602
        %v1614 = vpack.c.b16 %v1605, %v1604
        %v1625 = vsel %vm1282, %v1058, 0
        %v1628 = vsel %vm1282, %v1059, 0
        %v1631 = vsel %vm1282, %v1060, 0
        %v1634 = vsel %vm1282, %v1061, 0
        %v1637 = vsel %vm1282, %v1062, 0
        %v1640 = vsel %vm1282, %v1063, 0
        %v1643 = vsel %vm1282, %v1064, 0
        %v1646 = vsel %vm1282, %v1065, 0
        %v1649 = vsel %vm1282, %v1066, 0
        %v1652 = vsel %vm1282, %v1067, 0
        %v1655 = vsel %vm1282, %v1068, 0
        %v1658 = vsel %vm1282, %v1069, 0
        %v1661 = vsel %vm1282, %v1070, 0
        %v1664 = vsel %vm1282, %v1071, 0
        %v1667 = vsel %vm1282, %v1176, 0
        %v1670 = vsel %vm1282, %v1281, 0
        %1672 = vmatprep.subr.bf16.mxu0 0
        %1673 = vmatpush1.bf16.msra.mxu0 %v1606
        %1674 = vmatprep.subr.bf16.mxu0 0
        %1675 = vmatpush1.bf16.msra.mxu0 %v1607
        %1676 = vmatprep.subr.bf16.mxu0 0
        %1677 = vmatpush1.bf16.msra.mxu0 %v1608
        %1678 = vmatprep.subr.bf16.mxu0 0
        %1679 = vmatpush1.bf16.msra.mxu0 %v1609
        %1680 = vmatprep.subr.bf16.mxu0 0
        %1681 = vmatpush1.bf16.msra.mxu0 %v1610
        %1682 = vmatprep.subr.bf16.mxu0 0
        %1683 = vmatpush1.bf16.msra.mxu0 %v1611
        %1684 = vmatprep.subr.bf16.mxu0 0
        %1685 = vmatpush1.bf16.msra.mxu0 %v1612
        %1686 = vmatprep.subr.bf16.mxu0 0
        %1687 = vmatpush1.bf16.msra.mxu0 %v1613
        %1688 = vmatprep.subr.bf16.mxu0 0
        %1689 = vmatpush1.bf16.msra.mxu0 %v1614
        %1690 = vmatprep.subr.bf16.mxu0 0
        %1691 = vmatpush1.bf16.msra.mxu0 0
        %1692 = vmatprep.subr.bf16.mxu0 0
        %1693 = vmatpush1.bf16.msra.mxu0 0
        %1694 = vmatprep.subr.bf16.mxu0 0
        %1695 = vmatpush1.bf16.msra.mxu0 0
        %1696 = vmatprep.subr.bf16.mxu0 0
        %1697 = vmatpush1.bf16.msra.mxu0 0
        %1698 = vmatprep.subr.bf16.mxu0 0
        %1699 = vmatpush1.bf16.msra.mxu0 0
        %1700 = vmatprep.subr.bf16.mxu0 0
        %1701 = vmatpush1.bf16.msra.mxu0 0
        %1702 = vmatprep.subr.bf16.mxu0 0
        %1703 = vmatpush1.bf16.msra.mxu0 0
        %1704 = vmatprep.mubr.bf16.mxu0 %v1625
        %1705 = vmatmul.mubr.bf16.gmra.mrb[0].mxu0 %v1498
        %v1706 = vpop.f32.mrb[0].mxu0
        %v1707 = vadd.f32 %v1568, %v1706
        %v1708 = vpop.f32.mrb[0].mxu0
        %v1709 = vpop.f32.mrb[0].mxu0
        %v1710 = vadd.f32 %v1568, %v1709
        %v1711 = vpop.f32.mrb[0].mxu0
        %1712 = vmatprep.mubr.bf16.mxu0 %v1628
        %1713 = vmatmul.mubr.bf16.gmra.mrb[0].mxu0 %v1501
        %v1714 = vpop.f32.mrb[0].mxu0
        %v1715 = vadd.f32 %v1568, %v1714
        %v1716 = vpop.f32.mrb[0].mxu0
        %v1717 = vpop.f32.mrb[0].mxu0
        %v1718 = vadd.f32 %v1568, %v1717
        %v1719 = vpop.f32.mrb[0].mxu0
        %1720 = vmatprep.mubr.bf16.mxu0 %v1631
        %1721 = vmatmul.mubr.bf16.gmra.mrb[0].mxu0 %v1504
        %v1722 = vpop.f32.mrb[0].mxu0
        %v1723 = vadd.f32 %v1568, %v1722
        %v1724 = vpop.f32.mrb[0].mxu0
        %v1725 = vpop.f32.mrb[0].mxu0
        %v1726 = vadd.f32 %v1568, %v1725
        %v1727 = vpop.f32.mrb[0].mxu0
        %1728 = vmatprep.mubr.bf16.mxu0 %v1634
        %1729 = vmatmul.mubr.bf16.gmra.mrb[0].mxu0 %v1507
        %v1730 = vpop.f32.mrb[0].mxu0
        %v1731 = vadd.f32 %v1568, %v1730
        %v1732 = vpop.f32.mrb[0].mxu0
        %v1733 = vpop.f32.mrb[0].mxu0
        %v1734 = vadd.f32 %v1568, %v1733
        %v1735 = vpop.f32.mrb[0].mxu0
        %1736 = vmatprep.mubr.bf16.mxu0 %v1637
        %1737 = vmatmul.mubr.bf16.gmra.mrb[0].mxu0 %v1510
        %v1738 = vpop.f32.mrb[0].mxu0
        %v1739 = vadd.f32 %v1568, %v1738
        %v1740 = vpop.f32.mrb[0].mxu0
        %v1741 = vpop.f32.mrb[0].mxu0
        %v1742 = vadd.f32 %v1568, %v1741
        %v1743 = vpop.f32.mrb[0].mxu0
        %1744 = vmatprep.mubr.bf16.mxu0 %v1640
        %1745 = vmatmul.mubr.bf16.gmra.mrb[0].mxu0 %v1513
        %v1746 = vpop.f32.mrb[0].mxu0
        %v1747 = vadd.f32 %v1568, %v1746
        %v1748 = vpop.f32.mrb[0].mxu0
        %v1749 = vpop.f32.mrb[0].mxu0
        %v1750 = vadd.f32 %v1568, %v1749
        %v1751 = vpop.f32.mrb[0].mxu0
        %1752 = vmatprep.mubr.bf16.mxu0 %v1643
        %1753 = vmatmul.mubr.bf16.gmra.mrb[0].mxu0 %v1516
        %v1754 = vpop.f32.mrb[0].mxu0
        %v1755 = vadd.f32 %v1568, %v1754
        %v1756 = vpop.f32.mrb[0].mxu0
        %v1757 = vpop.f32.mrb[0].mxu0
        %v1758 = vadd.f32 %v1568, %v1757
        %v1759 = vpop.f32.mrb[0].mxu0
        %1760 = vmatprep.mubr.bf16.mxu0 %v1646
        %1761 = vmatmul.mubr.bf16.gmra.mrb[0].mxu0 %v1519
        %v1762 = vpop.f32.mrb[0].mxu0
        %v1763 = vadd.f32 %v1568, %v1762
        %v1764 = vpop.f32.mrb[0].mxu0
        %v1765 = vpop.f32.mrb[0].mxu0
        %v1766 = vadd.f32 %v1568, %v1765
        %v1767 = vpop.f32.mrb[0].mxu0
        %1768 = vmatprep.mubr.bf16.mxu0 %v1649
        %1769 = vmatmul.mubr.bf16.gmra.mrb[0].mxu0 %v1522
        %v1770 = vpop.f32.mrb[0].mxu0
        %v1771 = vadd.f32 %v1568, %v1770
        %v1772 = vpop.f32.mrb[0].mxu0
        %v1773 = vpop.f32.mrb[0].mxu0
        %v1774 = vadd.f32 %v1568, %v1773
        %v1775 = vpop.f32.mrb[0].mxu0
        %1776 = vmatprep.mubr.bf16.mxu0 %v1652
        %1777 = vmatmul.mubr.bf16.gmra.mrb[0].mxu0 %v1525
        %v1778 = vpop.f32.mrb[0].mxu0
        %v1779 = vadd.f32 %v1568, %v1778
        %v1780 = vpop.f32.mrb[0].mxu0
        %v1781 = vpop.f32.mrb[0].mxu0
        %v1782 = vadd.f32 %v1568, %v1781
        %v1783 = vpop.f32.mrb[0].mxu0
        %1784 = vmatprep.mubr.bf16.mxu0 %v1655
        %1785 = vmatmul.mubr.bf16.gmra.mrb[0].mxu0 %v1528
        %v1786 = vpop.f32.mrb[0].mxu0
        %v1787 = vadd.f32 %v1568, %v1786
        %v1788 = vpop.f32.mrb[0].mxu0
        %v1789 = vpop.f32.mrb[0].mxu0
        %v1790 = vadd.f32 %v1568, %v1789
        %v1791 = vpop.f32.mrb[0].mxu0
        %1792 = vmatprep.mubr.bf16.mxu0 %v1658
        %1793 = vmatmul.mubr.bf16.gmra.mrb[0].mxu0 %v1531
        %v1794 = vpop.f32.mrb[0].mxu0
        %v1795 = vadd.f32 %v1568, %v1794
        %v1796 = vpop.f32.mrb[0].mxu0
        %v1797 = vpop.f32.mrb[0].mxu0
        %v1798 = vadd.f32 %v1568, %v1797
        %v1799 = vpop.f32.mrb[0].mxu0
        %1800 = vmatprep.mubr.bf16.mxu0 %v1661
        %1801 = vmatmul.mubr.bf16.gmra.mrb[0].mxu0 %v1534
        %v1802 = vpop.f32.mrb[0].mxu0
        %v1803 = vadd.f32 %v1568, %v1802
        %v1804 = vpop.f32.mrb[0].mxu0
        %v1805 = vpop.f32.mrb[0].mxu0
        %v1806 = vadd.f32 %v1568, %v1805
        %v1807 = vpop.f32.mrb[0].mxu0
        %1808 = vmatprep.mubr.bf16.mxu0 %v1664
        %1809 = vmatmul.mubr.bf16.gmra.mrb[0].mxu0 %v1537
        %v1810 = vpop.f32.mrb[0].mxu0
        %v1811 = vadd.f32 %v1568, %v1810
        %v1812 = vpop.f32.mrb[0].mxu0
        %v1813 = vpop.f32.mrb[0].mxu0
        %v1814 = vadd.f32 %v1568, %v1813
        %v1815 = vpop.f32.mrb[0].mxu0
        %1816 = vmatprep.mubr.bf16.mxu0 %v1667
        %1817 = vmatmul.mubr.bf16.gmra.mrb[0].mxu0 %v1540
        %v1818 = vpop.f32.mrb[0].mxu0
        %v1819 = vadd.f32 %v1568, %v1818
        %v1820 = vpop.f32.mrb[0].mxu0
        %v1821 = vpop.f32.mrb[0].mxu0
        %v1822 = vadd.f32 %v1568, %v1821
        %v1823 = vpop.f32.mrb[0].mxu0
        %1824 = vmatprep.mubr.bf16.mxu0 %v1670
        %1825 = vmatmul.mubr.bf16.gmra.mrb[0].mxu0 %v1543
        %v1826 = vpop.f32.mrb[0].mxu0
        %v1827 = vadd.f32 %v1568, %v1826
        %v1828 = vpop.f32.mrb[0].mxu0
        %v1829 = vpop.f32.mrb[0].mxu0
        %v1830 = vadd.f32 %v1568, %v1829
        %v1831 = vpop.f32.mrb[0].mxu0
        %1832 = vdwg.mxu0
        %v1833 = vmax.f32 %v1707, 0.0
        %v1834 = vmax.f32 %v1710, 0.0
        %v1835 = vmax.f32 %v1715, 0.0
        %v1836 = vmax.f32 %v1718, 0.0
        %v1837 = vmax.f32 %v1723, 0.0
        %v1838 = vmax.f32 %v1726, 0.0
        %v1839 = vmax.f32 %v1731, 0.0
        %v1840 = vmax.f32 %v1734, 0.0
        %v1841 = vmax.f32 %v1739, 0.0
        %v1842 = vmax.f32 %v1742, 0.0
        %v1843 = vmax.f32 %v1747, 0.0
        %v1844 = vmax.f32 %v1750, 0.0
        %v1845 = vmax.f32 %v1755, 0.0
        %v1846 = vmax.f32 %v1758, 0.0
        %v1847 = vmax.f32 %v1763, 0.0
        %v1848 = vmax.f32 %v1766, 0.0
        %v1849 = vmax.f32 %v1771, 0.0
        %v1850 = vmax.f32 %v1774, 0.0
        %v1851 = vmax.f32 %v1779, 0.0
        %v1852 = vmax.f32 %v1782, 0.0
        %v1853 = vmax.f32 %v1787, 0.0
        %v1854 = vmax.f32 %v1790, 0.0
        %v1855 = vmax.f32 %v1795, 0.0
        %v1856 = vmax.f32 %v1798, 0.0
        %v1857 = vmax.f32 %v1803, 0.0
        %v1858 = vmax.f32 %v1806, 0.0
        %v1859 = vmax.f32 %v1811, 0.0
        %v1860 = vmax.f32 %v1814, 0.0
        %v1861 = vmax.f32 %v1819, 0.0
        %v1862 = vmax.f32 %v1822, 0.0
        %v1863 = vmax.f32 %v1827, 0.0
        %v1864 = vmax.f32 %v1830, 0.0
        %v1865 = vpack.c.bf16 %v1834, %v1833
        %v1866 = vpack.c.bf16 %v1836, %v1835
        %v1867 = vpack.c.bf16 %v1838, %v1837
        %v1868 = vpack.c.bf16 %v1840, %v1839
        %v1869 = vpack.c.bf16 %v1842, %v1841
        %v1870 = vpack.c.bf16 %v1844, %v1843
        %v1871 = vpack.c.bf16 %v1846, %v1845
        %v1872 = vpack.c.bf16 %v1848, %v1847
        %v1873 = vpack.c.bf16 %v1850, %v1849
        %v1874 = vpack.c.bf16 %v1852, %v1851
        %v1875 = vpack.c.bf16 %v1854, %v1853
        %v1876 = vpack.c.bf16 %v1856, %v1855
        %v1877 = vpack.c.bf16 %v1858, %v1857
        %v1878 = vpack.c.bf16 %v1860, %v1859
        %v1879 = vpack.c.bf16 %v1862, %v1861
        %v1880 = vpack.c.bf16 %v1864, %v1863
        %v1881 = vld [vmem:[%s3] sm:$0xf]
        %v1882 = vld [vmem:[%s3 + $0x4] sm:$0xf]
        %v1883 = vld [vmem:[%s3 + $0x8] sm:$0xf]
        %v1884 = vld [vmem:[%s3 + $0xc] sm:$0xf]
        %v1885 = vld [vmem:[%s3 + $0x10] sm:$0xf]
        %v1886 = vld [vmem:[%s3 + $0x14] sm:$0xf]
        %v1887 = vld [vmem:[%s3 + $0x18] sm:$0xf]
        %v1888 = vld [vmem:[%s3 + $0x1c] sm:$0xf]
        %v1889 = vld [vmem:[%s3 + $0x20] sm:$0xf]
        %v1890 = vld [vmem:[%s3 + $0x24] sm:$0xf]
        %v1891 = vld [vmem:[%s3 + $0x28] sm:$0xf]
        %v1892 = vld [vmem:[%s3 + $0x2c] sm:$0xf]
        %v1893 = vld [vmem:[%s3 + $0x30] sm:$0xf]
        %v1894 = vld [vmem:[%s3 + $0x34] sm:$0xf]
        %v1895 = vld [vmem:[%s3 + $0x38] sm:$0xf]
        %v1896 = vld [vmem:[%s3 + $0x3c] sm:$0xf]
        %v1897 = vld [vmem:[%s4] sm:$0x1]
        %v1899 = vlaneseq
        %v1900 = vshrl.u32 %v1899, 7
        %v1901 = vsub.s32 0, %v1900
        %v1902 = vrot.slane %v1897, %v1901
        %v1920 = vunpack.c.l.b16 %v1881
        %v1921 = vunpack.c.l.b16 %v1882
        %v1922 = vunpack.c.l.b16 %v1883
        %v1923 = vunpack.c.l.b16 %v1884
        %v1924 = vunpack.c.l.b16 %v1885
        %v1925 = vunpack.c.l.b16 %v1886
        %v1926 = vunpack.c.l.b16 %v1887
        %v1927 = vunpack.c.l.b16 %v1888
        %v1928 = vunpack.c.l.b16 %v1889
        %v1929 = vunpack.c.l.b16 %v1890
        %v1930 = vunpack.c.l.b16 %v1891
        %v1931 = vunpack.c.l.b16 %v1892
        %v1932 = vunpack.c.l.b16 %v1893
        %v1933 = vunpack.c.l.b16 %v1894
        %v1934 = vunpack.c.l.b16 %v1895
        %v1935 = vunpack.c.l.b16 %v1896
        %v1936 = vpack.c.b16 %v1921, %v1920
        %v1937 = vpack.c.b16 %v1923, %v1922
        %v1938 = vpack.c.b16 %v1925, %v1924
        %v1939 = vpack.c.b16 %v1927, %v1926
        %v1940 = vpack.c.b16 %v1929, %v1928
        %v1941 = vpack.c.b16 %v1931, %v1930
        %v1942 = vpack.c.b16 %v1933, %v1932
        %v1943 = vpack.c.b16 %v1935, %v1934
        %1952 = vmatprep.subr.bf16.mxu0 0
        %1953 = vmatpush1.bf16.msra.mxu0 %v1936
        %1954 = vmatprep.subr.bf16.mxu0 0
        %1955 = vmatpush1.bf16.msra.mxu0 %v1937
        %1956 = vmatprep.subr.bf16.mxu0 0
        %1957 = vmatpush1.bf16.msra.mxu0 %v1938
        %1958 = vmatprep.subr.bf16.mxu0 0
        %1959 = vmatpush1.bf16.msra.mxu0 %v1939
        %1960 = vmatprep.subr.bf16.mxu0 0
        %1961 = vmatpush1.bf16.msra.mxu0 %v1940
        %1962 = vmatprep.subr.bf16.mxu0 0
        %1963 = vmatpush1.bf16.msra.mxu0 %v1941
        %1964 = vmatprep.subr.bf16.mxu0 0
        %1965 = vmatpush1.bf16.msra.mxu0 %v1942
        %1966 = vmatprep.subr.bf16.mxu0 0
        %1967 = vmatpush1.bf16.msra.mxu0 %v1943
        %1968 = vmatprep.subr.bf16.mxu0 0
        %1969 = vmatpush1.bf16.msra.mxu0 0
        %1970 = vmatprep.subr.bf16.mxu0 0
        %1971 = vmatpush1.bf16.msra.mxu0 0
        %1972 = vmatprep.subr.bf16.mxu0 0
        %1973 = vmatpush1.bf16.msra.mxu0 0
        %1974 = vmatprep.subr.bf16.mxu0 0
        %1975 = vmatpush1.bf16.msra.mxu0 0
        %1976 = vmatprep.subr.bf16.mxu0 0
        %1977 = vmatpush1.bf16.msra.mxu0 0
        %1978 = vmatprep.subr.bf16.mxu0 0
        %1979 = vmatpush1.bf16.msra.mxu0 0
        %1980 = vmatprep.subr.bf16.mxu0 0
        %1981 = vmatpush1.bf16.msra.mxu0 0
        %1982 = vmatprep.subr.bf16.mxu0 0
        %1983 = vmatpush1.bf16.msra.mxu0 0
        %1984 = vmatprep.mubr.bf16.mxu0 0
        %1985 = vmatmul.mubr.bf16.gmra.mrb[0].mxu0 %v1865
        %v1986 = vpop.f32.mrb[0].mxu0
        %v1987 = vadd.f32 %v1902, %v1986
        %v1988 = vpop.f32.mrb[0].mxu0
        %v1989 = vpop.f32.mrb[0].mxu0
        %v1990 = vadd.f32 %v1902, %v1989
        %v1991 = vpop.f32.mrb[0].mxu0
        %1992 = vmatprep.mubr.bf16.mxu0 0
        %1993 = vmatmul.mubr.bf16.gmra.mrb[0].mxu0 %v1866
        %v1994 = vpop.f32.mrb[0].mxu0
        %v1995 = vadd.f32 %v1902, %v1994
        %v1996 = vpop.f32.mrb[0].mxu0
        %v1997 = vpop.f32.mrb[0].mxu0
        %v1998 = vadd.f32 %v1902, %v1997
        %v1999 = vpop.f32.mrb[0].mxu0
        %2000 = vmatprep.mubr.bf16.mxu0 0
        %2001 = vmatmul.mubr.bf16.gmra.mrb[0].mxu0 %v1867
        %v2002 = vpop.f32.mrb[0].mxu0
        %v2003 = vadd.f32 %v1902, %v2002
        %v2004 = vpop.f32.mrb[0].mxu0
        %v2005 = vpop.f32.mrb[0].mxu0
        %v2006 = vadd.f32 %v1902, %v2005
        %v2007 = vpop.f32.mrb[0].mxu0
        %2008 = vmatprep.mubr.bf16.mxu0 0
        %2009 = vmatmul.mubr.bf16.gmra.mrb[0].mxu0 %v1868
        %v2010 = vpop.f32.mrb[0].mxu0
        %v2011 = vadd.f32 %v1902, %v2010
        %v2012 = vpop.f32.mrb[0].mxu0
        %v2013 = vpop.f32.mrb[0].mxu0
        %v2014 = vadd.f32 %v1902, %v2013
        %v2015 = vpop.f32.mrb[0].mxu0
        %2016 = vmatprep.mubr.bf16.mxu0 0
        %2017 = vmatmul.mubr.bf16.gmra.mrb[0].mxu0 %v1869
        %v2018 = vpop.f32.mrb[0].mxu0
        %v2019 = vadd.f32 %v1902, %v2018
        %v2020 = vpop.f32.mrb[0].mxu0
        %v2021 = vpop.f32.mrb[0].mxu0
        %v2022 = vadd.f32 %v1902, %v2021
        %v2023 = vpop.f32.mrb[0].mxu0
        %2024 = vmatprep.mubr.bf16.mxu0 0
        %2025 = vmatmul.mubr.bf16.gmra.mrb[0].mxu0 %v1870
        %v2026 = vpop.f32.mrb[0].mxu0
        %v2027 = vadd.f32 %v1902, %v2026
        %v2028 = vpop.f32.mrb[0].mxu0
        %v2029 = vpop.f32.mrb[0].mxu0
        %v2030 = vadd.f32 %v1902, %v2029
        %v2031 = vpop.f32.mrb[0].mxu0
        %2032 = vmatprep.mubr.bf16.mxu0 0
        %2033 = vmatmul.mubr.bf16.gmra.mrb[0].mxu0 %v1871
        %v2034 = vpop.f32.mrb[0].mxu0
        %v2035 = vadd.f32 %v1902, %v2034
        %v2036 = vpop.f32.mrb[0].mxu0
        %v2037 = vpop.f32.mrb[0].mxu0
        %v2038 = vadd.f32 %v1902, %v2037
        %v2039 = vpop.f32.mrb[0].mxu0
        %2040 = vmatprep.mubr.bf16.mxu0 0
        %2041 = vmatmul.mubr.bf16.gmra.mrb[0].mxu0 %v1872
        %v2042 = vpop.f32.mrb[0].mxu0
        %v2043 = vadd.f32 %v1902, %v2042
        %v2044 = vpop.f32.mrb[0].mxu0
        %v2045 = vpop.f32.mrb[0].mxu0
        %v2046 = vadd.f32 %v1902, %v2045
        %v2047 = vpop.f32.mrb[0].mxu0
        %2048 = vmatprep.mubr.bf16.mxu0 0
        %2049 = vmatmul.mubr.bf16.gmra.mrb[0].mxu0 %v1873
        %v2050 = vpop.f32.mrb[0].mxu0
        %v2051 = vadd.f32 %v1902, %v2050
        %v2052 = vpop.f32.mrb[0].mxu0
        %v2053 = vpop.f32.mrb[0].mxu0
        %v2054 = vadd.f32 %v1902, %v2053
        %v2055 = vpop.f32.mrb[0].mxu0
        %2056 = vmatprep.mubr.bf16.mxu0 0
        %2057 = vmatmul.mubr.bf16.gmra.mrb[0].mxu0 %v1874
        %v2058 = vpop.f32.mrb[0].mxu0
        %v2059 = vadd.f32 %v1902, %v2058
        %v2060 = vpop.f32.mrb[0].mxu0
        %v2061 = vpop.f32.mrb[0].mxu0
        %v2062 = vadd.f32 %v1902, %v2061
        %v2063 = vpop.f32.mrb[0].mxu0
        %2064 = vmatprep.mubr.bf16.mxu0 0
        %2065 = vmatmul.mubr.bf16.gmra.mrb[0].mxu0 %v1875
        %v2066 = vpop.f32.mrb[0].mxu0
        %v2067 = vadd.f32 %v1902, %v2066
        %v2068 = vpop.f32.mrb[0].mxu0
        %v2069 = vpop.f32.mrb[0].mxu0
        %v2070 = vadd.f32 %v1902, %v2069
        %v2071 = vpop.f32.mrb[0].mxu0
        %2072 = vmatprep.mubr.bf16.mxu0 0
        %2073 = vmatmul.mubr.bf16.gmra.mrb[0].mxu0 %v1876
        %v2074 = vpop.f32.mrb[0].mxu0
        %v2075 = vadd.f32 %v1902, %v2074
        %v2076 = vpop.f32.mrb[0].mxu0
        %v2077 = vpop.f32.mrb[0].mxu0
        %v2078 = vadd.f32 %v1902, %v2077
        %v2079 = vpop.f32.mrb[0].mxu0
        %2080 = vmatprep.mubr.bf16.mxu0 0
        %2081 = vmatmul.mubr.bf16.gmra.mrb[0].mxu0 %v1877
        %v2082 = vpop.f32.mrb[0].mxu0
        %v2083 = vadd.f32 %v1902, %v2082
        %v2084 = vpop.f32.mrb[0].mxu0
        %v2085 = vpop.f32.mrb[0].mxu0
        %v2086 = vadd.f32 %v1902, %v2085
        %v2087 = vpop.f32.mrb[0].mxu0
        %2088 = vmatprep.mubr.bf16.mxu0 0
        %2089 = vmatmul.mubr.bf16.gmra.mrb[0].mxu0 %v1878
        %v2090 = vpop.f32.mrb[0].mxu0
        %v2091 = vadd.f32 %v1902, %v2090
        %v2092 = vpop.f32.mrb[0].mxu0
        %v2093 = vpop.f32.mrb[0].mxu0
        %v2094 = vadd.f32 %v1902, %v2093
        %v2095 = vpop.f32.mrb[0].mxu0
        %2096 = vmatprep.mubr.bf16.mxu0 0
        %2097 = vmatmul.mubr.bf16.gmra.mrb[0].mxu0 %v1879
        %v2098 = vpop.f32.mrb[0].mxu0
        %v2099 = vadd.f32 %v1902, %v2098
        %v2100 = vpop.f32.mrb[0].mxu0
        %v2101 = vpop.f32.mrb[0].mxu0
        %v2102 = vadd.f32 %v1902, %v2101
        %v2103 = vpop.f32.mrb[0].mxu0
        %2104 = vmatprep.mubr.bf16.mxu0 0
        %2105 = vmatmul.mubr.bf16.gmra.mrb[0].mxu0 %v1880
        %v2106 = vpop.f32.mrb[0].mxu0
        %v2107 = vadd.f32 %v1902, %v2106
        %v2108 = vpop.f32.mrb[0].mxu0
        %v2109 = vpop.f32.mrb[0].mxu0
        %v2110 = vadd.f32 %v1902, %v2109
        %v2111 = vpop.f32.mrb[0].mxu0
        %2112 = vdwg.mxu0
        %v2113 = vlaneseq
        %v2114 = vand.u32 %v2113, 127
        %vm2115 = vcmp.ge.s32.totalorder %v2114, 54
        %vm2116 = vcmp.lt.s32.totalorder %v2114, 63
        %vm2117 = vmand %vm2115, %vm2116
        %v2118 = vmul.f32 %v1987, 0.5
        %v2119 = vmul.f32 %v1990, 0.5
        %v2120 = vmul.f32 %v1995, 0.5
        %v2121 = vmul.f32 %v1998, 0.5
        %v2122 = vmul.f32 %v2003, 0.5
        %v2123 = vmul.f32 %v2006, 0.5
        %v2124 = vmul.f32 %v2011, 0.5
        %v2125 = vmul.f32 %v2014, 0.5
        %v2126 = vmul.f32 %v2019, 0.5
        %v2127 = vmul.f32 %v2022, 0.5
        %v2128 = vmul.f32 %v2027, 0.5
        %v2129 = vmul.f32 %v2030, 0.5
        %v2130 = vmul.f32 %v2035, 0.5
        %v2131 = vmul.f32 %v2038, 0.5
        %v2132 = vmul.f32 %v2043, 0.5
        %v2133 = vmul.f32 %v2046, 0.5
        %v2134 = vmul.f32 %v2051, 0.5
        %v2135 = vmul.f32 %v2054, 0.5
        %v2136 = vmul.f32 %v2059, 0.5
        %v2137 = vmul.f32 %v2062, 0.5
        %v2138 = vmul.f32 %v2067, 0.5
        %v2139 = vmul.f32 %v2070, 0.5
        %v2140 = vmul.f32 %v2075, 0.5
        %v2141 = vmul.f32 %v2078, 0.5
        %v2142 = vmul.f32 %v2083, 0.5
        %v2143 = vmul.f32 %v2086, 0.5
        %v2144 = vmul.f32 %v2091, 0.5
        %v2145 = vmul.f32 %v2094, 0.5
        %v2146 = vmul.f32 %v2099, 0.5
        %v2147 = vmul.f32 %v2102, 0.5
        %v2148 = vmul.f32 %v2107, 0.5
        %v2149 = vmul.f32 %v2110, 0.5
        %v2150 = vtanh.pop %v2118
        %v2151 = vtanh.pop %v2119
        %v2152 = vtanh.pop %v2120
        %v2153 = vtanh.pop %v2121
        %v2154 = vtanh.pop %v2122
        %v2155 = vtanh.pop %v2123
        %v2156 = vtanh.pop %v2124
        %v2157 = vtanh.pop %v2125
        %v2158 = vtanh.pop %v2126
        %v2159 = vtanh.pop %v2127
        %v2160 = vtanh.pop %v2128
        %v2161 = vtanh.pop %v2129
        %v2162 = vtanh.pop %v2130
        %v2163 = vtanh.pop %v2131
        %v2164 = vtanh.pop %v2132
        %v2165 = vtanh.pop %v2133
        %v2166 = vtanh.pop %v2134
        %v2167 = vtanh.pop %v2135
        %v2168 = vtanh.pop %v2136
        %v2169 = vtanh.pop %v2137
        %v2170 = vtanh.pop %v2138
        %v2171 = vtanh.pop %v2139
        %v2172 = vtanh.pop %v2140
        %v2173 = vtanh.pop %v2141
        %v2174 = vtanh.pop %v2142
        %v2175 = vtanh.pop %v2143
        %v2176 = vtanh.pop %v2144
        %v2177 = vtanh.pop %v2145
        %v2178 = vtanh.pop %v2146
        %v2179 = vtanh.pop %v2147
        %v2180 = vtanh.pop %v2148
        %v2181 = vtanh.pop %v2149
        %v2182 = vadd.f32 %v2150, 1.0
        %v2183 = vadd.f32 %v2151, 1.0
        %v2184 = vadd.f32 %v2152, 1.0
        %v2185 = vadd.f32 %v2153, 1.0
        %v2186 = vadd.f32 %v2154, 1.0
        %v2187 = vadd.f32 %v2155, 1.0
        %v2188 = vadd.f32 %v2156, 1.0
        %v2189 = vadd.f32 %v2157, 1.0
        %v2190 = vadd.f32 %v2158, 1.0
        %v2191 = vadd.f32 %v2159, 1.0
        %v2192 = vadd.f32 %v2160, 1.0
        %v2193 = vadd.f32 %v2161, 1.0
        %v2194 = vadd.f32 %v2162, 1.0
        %v2195 = vadd.f32 %v2163, 1.0
        %v2196 = vadd.f32 %v2164, 1.0
        %v2197 = vadd.f32 %v2165, 1.0
        %v2198 = vadd.f32 %v2166, 1.0
        %v2199 = vadd.f32 %v2167, 1.0
        %v2200 = vadd.f32 %v2168, 1.0
        %v2201 = vadd.f32 %v2169, 1.0
        %v2202 = vadd.f32 %v2170, 1.0
        %v2203 = vadd.f32 %v2171, 1.0
        %v2204 = vadd.f32 %v2172, 1.0
        %v2205 = vadd.f32 %v2173, 1.0
        %v2206 = vadd.f32 %v2174, 1.0
        %v2207 = vadd.f32 %v2175, 1.0
        %v2208 = vadd.f32 %v2176, 1.0
        %v2209 = vadd.f32 %v2177, 1.0
        %v2210 = vadd.f32 %v2178, 1.0
        %v2211 = vadd.f32 %v2179, 1.0
        %v2212 = vadd.f32 %v2180, 1.0
        %v2213 = vadd.f32 %v2181, 1.0
        %v2214 = vmul.f32 %v2182, 0.5
        %v2215 = vmul.f32 %v2183, 0.5
        %v2216 = vmul.f32 %v2184, 0.5
        %v2217 = vmul.f32 %v2185, 0.5
        %v2218 = vmul.f32 %v2186, 0.5
        %v2219 = vmul.f32 %v2187, 0.5
        %v2220 = vmul.f32 %v2188, 0.5
        %v2221 = vmul.f32 %v2189, 0.5
        %v2222 = vmul.f32 %v2190, 0.5
        %v2223 = vmul.f32 %v2191, 0.5
        %v2224 = vmul.f32 %v2192, 0.5
        %v2225 = vmul.f32 %v2193, 0.5
        %v2226 = vmul.f32 %v2194, 0.5
        %v2227 = vmul.f32 %v2195, 0.5
        %v2228 = vmul.f32 %v2196, 0.5
        %v2229 = vmul.f32 %v2197, 0.5
        %v2230 = vmul.f32 %v2198, 0.5
        %v2231 = vmul.f32 %v2199, 0.5
        %v2232 = vmul.f32 %v2200, 0.5
        %v2233 = vmul.f32 %v2201, 0.5
        %v2234 = vmul.f32 %v2202, 0.5
        %v2235 = vmul.f32 %v2203, 0.5
        %v2236 = vmul.f32 %v2204, 0.5
        %v2237 = vmul.f32 %v2205, 0.5
        %v2238 = vmul.f32 %v2206, 0.5
        %v2239 = vmul.f32 %v2207, 0.5
        %v2240 = vmul.f32 %v2208, 0.5
        %v2241 = vmul.f32 %v2209, 0.5
        %v2242 = vmul.f32 %v2210, 0.5
        %v2243 = vmul.f32 %v2211, 0.5
        %v2244 = vmul.f32 %v2212, 0.5
        %v2245 = vmul.f32 %v2213, 0.5
        %v2246 = vsel %vm2117, %v2214, %v1987
        %v2247 = vsel %vm2117, %v2215, %v1990
        %v2248 = vsel %vm2117, %v2216, %v1995
        %v2249 = vsel %vm2117, %v2217, %v1998
        %v2250 = vsel %vm2117, %v2218, %v2003
        %v2251 = vsel %vm2117, %v2219, %v2006
        %v2252 = vsel %vm2117, %v2220, %v2011
        %v2253 = vsel %vm2117, %v2221, %v2014
        %v2254 = vsel %vm2117, %v2222, %v2019
        %v2255 = vsel %vm2117, %v2223, %v2022
        %v2256 = vsel %vm2117, %v2224, %v2027
        %v2257 = vsel %vm2117, %v2225, %v2030
        %v2258 = vsel %vm2117, %v2226, %v2035
        %v2259 = vsel %vm2117, %v2227, %v2038
        %v2260 = vsel %vm2117, %v2228, %v2043
        %v2261 = vsel %vm2117, %v2229, %v2046
        %v2262 = vsel %vm2117, %v2230, %v2051
        %v2263 = vsel %vm2117, %v2231, %v2054
        %v2264 = vsel %vm2117, %v2232, %v2059
        %v2265 = vsel %vm2117, %v2233, %v2062
        %v2266 = vsel %vm2117, %v2234, %v2067
        %v2267 = vsel %vm2117, %v2235, %v2070
        %v2268 = vsel %vm2117, %v2236, %v2075
        %v2269 = vsel %vm2117, %v2237, %v2078
        %v2270 = vsel %vm2117, %v2238, %v2083
        %v2271 = vsel %vm2117, %v2239, %v2086
        %v2272 = vsel %vm2117, %v2240, %v2091
        %v2273 = vsel %vm2117, %v2241, %v2094
        %v2274 = vsel %vm2117, %v2242, %v2099
        %v2275 = vsel %vm2117, %v2243, %v2102
        %v2276 = vsel %vm2117, %v2244, %v2107
        %v2277 = vsel %vm2117, %v2245, %v2110
        %2278 = vst [vmem:[%s217] sm:$0xff] %v2246
        %2279 = vst [vmem:[%s217 + $0x8] sm:$0xff] %v2247
        %2280 = vst [vmem:[%s217 + $0x10] sm:$0xff] %v2248
        %2281 = vst [vmem:[%s217 + $0x18] sm:$0xff] %v2249
        %2282 = vst [vmem:[%s217 + $0x20] sm:$0xff] %v2250
        %2283 = vst [vmem:[%s217 + $0x28] sm:$0xff] %v2251
        %2284 = vst [vmem:[%s217 + $0x30] sm:$0xff] %v2252
        %2285 = vst [vmem:[%s217 + $0x38] sm:$0xff] %v2253
        %2286 = vst [vmem:[%s217 + $0x40] sm:$0xff] %v2254
        %2287 = vst [vmem:[%s217 + $0x48] sm:$0xff] %v2255
        %2288 = vst [vmem:[%s217 + $0x50] sm:$0xff] %v2256
        %2289 = vst [vmem:[%s217 + $0x58] sm:$0xff] %v2257
        %2290 = vst [vmem:[%s217 + $0x60] sm:$0xff] %v2258
        %2291 = vst [vmem:[%s217 + $0x68] sm:$0xff] %v2259
        %2292 = vst [vmem:[%s217 + $0x70] sm:$0xff] %v2260
        %2293 = vst [vmem:[%s217 + $0x78] sm:$0xff] %v2261
        %2294 = vst [vmem:[%s217 + $0x80] sm:$0xff] %v2262
        %2295 = vst [vmem:[%s217 + $0x88] sm:$0xff] %v2263
        %2296 = vst [vmem:[%s217 + $0x90] sm:$0xff] %v2264
        %2297 = vst [vmem:[%s217 + $0x98] sm:$0xff] %v2265
        %2298 = vst [vmem:[%s217 + $0xa0] sm:$0xff] %v2266
        %2299 = vst [vmem:[%s217 + $0xa8] sm:$0xff] %v2267
        %2300 = vst [vmem:[%s217 + $0xb0] sm:$0xff] %v2268
        %2301 = vst [vmem:[%s217 + $0xb8] sm:$0xff] %v2269
        %2302 = vst [vmem:[%s217 + $0xc0] sm:$0xff] %v2270
        %2303 = vst [vmem:[%s217 + $0xc8] sm:$0xff] %v2271
        %2304 = vst [vmem:[%s217 + $0xd0] sm:$0xff] %v2272
        %2305 = vst [vmem:[%s217 + $0xd8] sm:$0xff] %v2273
        %2306 = vst [vmem:[%s217 + $0xe0] sm:$0xff] %v2274
        %2307 = vst [vmem:[%s217 + $0xe8] sm:$0xff] %v2275
        %2308 = vst [vmem:[%s217 + $0xf0] sm:$0xff] %v2276
        %2309 = vst [vmem:[%s217 + $0xf8] sm:$0xff] %v2277
        %s2310 = sand.u32 %s137, 1
        %s2311 = scalar_lea.sflag [#allocation3], %s2310
        %s2312 = sand.u32 %s137, 1
        %s2313 = smul.addr %s2312, 256
        %s2314 = scalar_lea.vmem [#allocation2], %s2313
        // Predicated region
        $region41: #{tpu_custom_call.1} parent=39 // pred_check
          %p2315 = pneg %p147
        $region42: #{tpu_custom_call.1} parent=39 // pred_check_branch
          %2317 = sbr.rel (%p2315) target = $region44
        $region43: #{tpu_custom_call.1} parent=39 // pred_region
          %s2319 = ssub.s32 4096, 4096
          %2320 = vsyncadd %s2311, %s2319
          %s2321 = smul.addr %s19, 32
          %s2322 = smul.addr %s2321, 128
          %s2323 = scalar_lea.hbm %s5, %s2322
          %s2324 = sshll.u32 %s2314, 4
          %s2325 = int_to_ptr.vmem [resolvable:$true] %s2324
          %2330 = dma.vmem_to_hbm [thread:$0]  %s2325, 4096, %s2323, %s2311, 128, 128, 8
        $region44: #{tpu_custom_call.1} parent=39 // pred_fallthru
          _
      $region40: #{tpu_custom_call.1} parent=5 // pred_fallthru
        _
      %p2331 = scmp.le.s32.totalorder 2, %s14
      // Predicated region
      $region45: #{tpu_custom_call.1} parent=5 // pred_check
        %p2332 = pneg %p2331
      $region46: #{tpu_custom_call.1} parent=5 // pred_check_branch
        %2334 = sbr.rel (%p2332) target = $region48
      $region47: #{tpu_custom_call.1} parent=5 // pred_region
        %s2335 = ssub.s32 %s14, 2
        // Predicated region
        $region49: #{tpu_custom_call.1} parent=47 // pred_check
          %p2336 = pneg %p153
        $region50: #{tpu_custom_call.1} parent=47 // pred_check_branch
          %2338 = sbr.rel (%p2336) target = $region52
        $region51: #{tpu_custom_call.1} parent=47 // pred_region
          %s2339 = sand.u32 %s138, 1
          %s2340 = scalar_lea.sflag [#allocation3], %s2339
          %s2341 = sand.u32 %s138, 1
          %s2342 = smul.addr %s2341, 256
          %s2343 = scalar_lea.vmem [#allocation2], %s2342
          %2344 = dma.done %s2340, 4096
        $region52: #{tpu_custom_call.1} parent=47 // pred_fallthru
          _
      $region48: #{tpu_custom_call.1} parent=5 // pred_fallthru
        _
    $region6: #{tpu_custom_call.1} parent=1 // loop_footer
      %s18 = sadd.s32 1, %s14
    $region7: #{tpu_custom_call.1} parent=1 // loop_footer_branch
      %13 = sbr.rel target = $region3
    $region8: #{tpu_custom_call.1} parent=1 // loop_exit
      _
    %2345 = vsyncpa [#allocation3], 1
    %s2346 = scalar_lea.sflag [#allocation3], 1
    %2347 = vsyncpa %s2346, 1

</llo_original>
